<compile_context>
chip_gen: v6e
topology: v6e:2x2x1
jax: 0.10.0
libtpu: 0.0.40
codegen_flags: <defaults>
</compile_context>

<pallas_src>
import functools
import numpy as np

import jax
import jax.numpy as jnp
from jax.experimental import pallas as pl
from jax.experimental.pallas import tpu as pltpu

# ----------------------------- configuration --------------------------------
B = 2            # batch_size
T = 8            # sequence_length
HID = 32         # hidden_size
DEPTH = 2        # hidden_layer_depth
LAT = 8          # latent_length
CIN, PH, PW = 3, 2, 3                 # pre-unpool NCHW spatial (channels, 2, 3)
FEAT = CIN * PH * PW                  # 18; output_size forced by view(B,3,2,3)
UH, UW = 2 * PH, 2 * PW               # 4, 6  (after MaxUnpool2d(2))
KH, KW = 3, 5                         # ConvTranspose2d kernel
OH, OW = UH + KH - 1, UW + KW - 1     # 6, 10 (module's self.H, self.W)
OPAD = 128                            # lane-dense padded output width (>= 60)


# ------------------------------- fused kernel --------------------------------
def fused_decoder_kernel(latent_ref, rep_ref, w1t_ref, b1_ref,
                         wih_ref, whh_ref, blstm_ref,
                         w2t_ref, b2_ref, meff_ref, cb_ref,
                         o_ref, xf_scr, gx_scr,
                         *, seq_b, n_t, hid, depth):
    # ---- (1) latent -> hidden, then replicate row b over its T LSTM-batch rows
    #      xf[b*T + t, :] = h_state[b, :]   (== repeat(T,1,1).transpose_(0,1))
    h_state = jnp.dot(latent_ref[...], w1t_ref[...],
                      preferred_element_type=jnp.float32) + b1_ref[...]     # (B, H)
    xf_scr[...] = jnp.dot(rep_ref[...], h_state,
                          preferred_element_type=jnp.float32)               # (B*T, H)

    # ---- (2) stacked LSTM; sequence axis = original batch B, LSTM batch = T
    for l in range(depth):
        wih = wih_ref[l]                       # (H, 4H)
        whh = whh_ref[l]                       # (H, 4H)
        b = blstm_ref[l]                       # (1, 4H)
        # Hoisted input projection: one MXU matmul for all B*T rows of this layer.
        gx_scr[...] = jnp.dot(xf_scr[...], wih,
                              preferred_element_type=jnp.float32) + b       # (B*T, 4H)
        h = jnp.zeros((n_t, hid), jnp.float32)
        c = jnp.zeros((n_t, hid), jnp.float32)
        for s in range(seq_b):                 # serial recurrence, B tiny steps
            gates = gx_scr[pl.ds(s * n_t, n_t), :] + jnp.dot(
                h, whh, preferred_element_type=jnp.float32)                 # (T, 4H)
            sg = jax.nn.sigmoid(gates)         # one EUP pass over the full vreg
            tg = jnp.tanh(gates)               # one EUP pass over the full vreg
            i = sg[:, 0 * hid:1 * hid]
            f = sg[:, 1 * hid:2 * hid]
            g = tg[:, 2 * hid:3 * hid]
            o = sg[:, 3 * hid:4 * hid]
            c = f * c + i * g
            h = o * jnp.tanh(c)
            # Layer output becomes next layer's input (gx_scr already consumed
            # for this row block, so the in-place overwrite is safe).
            xf_scr[pl.ds(s * n_t, n_t), :] = h

    # ---- (3)+(4) hidden -> 18 features, then fused unpool + deconv + ReLU.
    # meff_ref[b] already folds the MaxUnpool one-hot scatter (rows of the
    # (72,60) deconv matrix gathered by mp_indices), so each batch element is a
    # single (T,18)@(18,128) MXU matmul with lane-dense output.
    for s in range(seq_b):
        feat = jnp.dot(xf_scr[pl.ds(s * n_t, n_t), :], w2t_ref[...],
                       preferred_element_type=jnp.float32) + b2_ref[...]    # (T, 18)
        y = jnp.dot(feat, meff_ref[s],
                    preferred_element_type=jnp.float32) + cb_ref[...]       # (T, 128)
        o_ref[pl.ds(s * n_t, n_t), :] = jnp.maximum(y, 0.0)


# ------------------------------ parameter setup -------------------------------
def build_deconv_matrix(conv_w):
    # conv_w: (CIN, 1, KH, KW).  M[(c,ih,iw) , (oh,ow)] = w[c,0,oh-ih,ow-iw]
    m = np.zeros((CIN * UH * UW, OH * OW), np.float32)
    w = np.asarray(conv_w)
    for c in range(CIN):
        for ih in range(UH):
            for iw in range(UW):
                for dh in range(KH):
                    for dw in range(KW):
                        m[c * UH * UW + ih * UW + iw,
                          (ih + dh) * OW + (iw + dw)] = w[c, 0, dh, dw]
    return m


def make_params(key):
    ks = jax.random.split(key, 8 + 4 * DEPTH)

    def uni(k, shape, bound):
        return jax.random.uniform(k, shape, jnp.float32, -bound, bound)

    # latent_to_hidden / hidden_to_output (xavier_uniform weights)
    w1 = uni(ks[0], (HID, LAT), float(np.sqrt(6.0 / (LAT + HID))))
    b1 = uni(ks[1], (HID,), 1.0 / np.sqrt(LAT))
    w2 = uni(ks[2], (FEAT, HID), float(np.sqrt(6.0 / (HID + FEAT))))
    b2 = uni(ks[3], (FEAT,), 1.0 / np.sqrt(HID))

    # LSTM(hidden, hidden, DEPTH), PyTorch default uniform(-1/sqrt(H), 1/sqrt(H))
    lb = 1.0 / np.sqrt(HID)
    wih_t, whh_t, blstm = [], [], []
    for l in range(DEPTH):
        wih = uni(ks[4 + 4 * l], (4 * HID, HID), lb)
        whh = uni(ks[5 + 4 * l], (4 * HID, HID), lb)
        bih = uni(ks[6 + 4 * l], (4 * HID,), lb)
        bhh = uni(ks[7 + 4 * l], (4 * HID,), lb)
        wih_t.append(wih.T)
        whh_t.append(whh.T)
        blstm.append((bih + bhh)[None, :])

    # ConvTranspose2d(3, 1, (3, 5))
    cb_bound = 1.0 / np.sqrt(CIN * KH * KW)
    conv_w = uni(ks[4 + 4 * DEPTH], (CIN, 1, KH, KW), cb_bound)
    conv_b = uni(ks[5 + 4 * DEPTH], (1,), cb_bound)

    # (72, 60) transposed-conv matrix, padded to lane-dense 128 output columns.
    m = build_deconv_matrix(conv_w)
    m_pad = np.zeros((CIN * UH * UW, OPAD), np.float32)
    m_pad[:, :OH * OW] = m
    cb_pad = np.zeros((1, OPAD), np.float32)
    cb_pad[:, :OH * OW] = float(conv_b[0])

    # Replication matrix: xf[b*T + t, :] = h_state[b, :]  (done on the MXU).
    rep = np.zeros((B * T, B), np.float32)
    rep[np.arange(B * T), np.arange(B * T) // T] = 1.0

    return dict(
        w1t=w1.T, b1=b1[None, :],
        w2t=w2.T, b2=b2[None, :],
        wih_all=jnp.stack(wih_t),            # (DEPTH, HID, 4H)
        whh_all=jnp.stack(whh_t),            # (DEPTH, HID, 4H)
        blstm_all=jnp.stack(blstm),          # (DEPTH, 1, 4H)
        conv_w=conv_w, conv_b=conv_b,
        Mpad=jnp.asarray(m_pad),             # (72, 128)
        cb=jnp.asarray(cb_pad),              # (1, 128)
        rep=jnp.asarray(rep),                # (B*T, B)
    )


# --------------------------- Pallas-backed forward ----------------------------
def cnn_decoder_forward_pallas(latent, mp_indices, params):
    # Per-batch effective unpool+deconv matrix (tiny gather done once, in the
    # wrapper): M_eff[b, k, :] = Mpad[channel_offset[k] + mp_indices[b, k], :].
    # NOTE: duplicate indices inside a channel plane would *accumulate* here
    # while PyTorch MaxUnpool2d would overwrite; valid MaxPool2d indices are
    # unique per 2x2 window, so both agree for real inputs.
    mp_flat = mp_indices.reshape(B, FEAT).astype(jnp.int32)
    chan_off = (jnp.arange(FEAT, dtype=jnp.int32) // (PH * PW)) * (UH * UW)
    tgt = mp_flat + chan_off[None, :]                        # (B, 18) in [0, 72)
    m_eff = jnp.take(params['Mpad'], tgt, axis=0)            # (B, 18, OPAD)

    kernel = functools.partial(fused_decoder_kernel,
                               seq_b=B, n_t=T, hid=HID, depth=DEPTH)
    y = pl.pallas_call(
        kernel,
        out_shape=jax.ShapeDtypeStruct((B * T, OPAD), jnp.float32),
        grid=(1,),
        in_specs=[
            pl.BlockSpec((B, LAT), lambda i: (0, 0)),                   # latent
            pl.BlockSpec((B * T, B), lambda i: (0, 0)),                 # rep
            pl.BlockSpec((LAT, HID), lambda i: (0, 0)),                 # w1t
            pl.BlockSpec((1, HID), lambda i: (0, 0)),                   # b1
            pl.BlockSpec((DEPTH, HID, 4 * HID), lambda i: (0, 0, 0)),   # wih_all
            pl.BlockSpec((DEPTH, HID, 4 * HID), lambda i: (0, 0, 0)),   # whh_all
            pl.BlockSpec((DEPTH, 1, 4 * HID), lambda i: (0, 0, 0)),     # blstm_all
            pl.BlockSpec((HID, FEAT), lambda i: (0, 0)),                # w2t
            pl.BlockSpec((1, FEAT), lambda i: (0, 0)),                  # b2
            pl.BlockSpec((B, FEAT, OPAD), lambda i: (0, 0, 0)),         # m_eff
            pl.BlockSpec((1, OPAD), lambda i: (0, 0)),                  # cb
        ],
        out_specs=pl.BlockSpec((B * T, OPAD), lambda i: (0, 0)),
        scratch_shapes=[pltpu.VMEM((B * T, HID), jnp.float32),          # layer io
                        pltpu.VMEM((B * T, 4 * HID), jnp.float32)],     # gates_x
        compiler_params=pltpu.CompilerParams(
            dimension_semantics=("arbitrary",)),
    )(latent, params['rep'], params['w1t'], params['b1'],
      params['wih_all'], params['whh_all'], params['blstm_all'],
      params['w2t'], params['b2'], m_eff, params['cb'])

    # Row b*T+t holds the flattened (6,10) image for (b,t); the module's
    # stack / transpose_ / reshape(B, 6, 10, T) is exactly this row-major
    # reinterpretation of the (B, T, 1, 6, 10) ordering.
    return y[:, :OH * OW].reshape(B, OH, OW, T)


# --------------------------- pure-JAX reference -------------------------------
def cnn_decoder_forward_ref(latent, mp_indices, params):
    h_state = latent @ params['w1t'] + params['b1'][0]
    x = jnp.broadcast_to(h_state[:, None, :], (B, T, HID))
    for l in range(DEPTH):
        wih_t = params['wih_all'][l]
        whh_t = params['whh_all'][l]
        b = params['blstm_all'][l][0]
        h = jnp.zeros((T, HID), jnp.float32)
        c = jnp.zeros((T, HID), jnp.float32)
        outs = []
        for s in range(B):
            gates = x[s] @ wih_t + h @ whh_t + b
            i = jax.nn.sigmoid(gates[:, :HID])
            f = jax.nn.sigmoid(gates[:, HID:2 * HID])
            g = jnp.tanh(gates[:, 2 * HID:3 * HID])
            o = jax.nn.sigmoid(gates[:, 3 * HID:])
            c = f * c + i * g
            h = o * jnp.tanh(c)
            outs.append(h)
        x = jnp.stack(outs, axis=0)
    out = x @ params['w2t'] + params['b2'][0]                           # (B, T, 18)

    w, cb = params['conv_w'], params['conv_b']
    seq = []
    iota = jnp.arange(UH * UW)
    for t in range(T):
        vals = out[:, t, :].reshape(B, CIN, PH * PW)
        idx = mp_indices.reshape(B, CIN, PH * PW)
        up = jnp.sum(vals[..., :, None]
                     * (idx[..., :, None] == iota).astype(jnp.float32), axis=2)
        up = up.reshape(B, CIN, UH, UW)
        y = jnp.zeros((B, OH, OW), jnp.float32)
        for dh in range(KH):
            for dw in range(KW):
                y = y.at[:, dh:dh + UH, dw:dw + UW].add(
                    jnp.einsum('bchw,c->bhw', up, w[:, 0, dh, dw]))
        y = jnp.maximum(y + cb[0], 0.0)
        seq.append(y[:, None, :, :])                                    # (B,1,6,10)
    stacked = jnp.swapaxes(jnp.stack(seq, axis=0), 0, 1)                # (B,T,1,6,10)
    return stacked.reshape(B, OH, OW, T)


# ----------------------------------- main -------------------------------------
if __name__ == "__main__":
    key = jax.random.PRNGKey(0)
    k_param, k_latent, k_idx = jax.random.split(key, 3)

    params = make_params(k_param)
    latent = jax.random.normal(k_latent, (B, LAT), jnp.float32)

    # Valid MaxPool2d(2) indices for a (B, 3, 4, 6) source: per 2x2 window pick
    # one of the 4 positions; index is flat into the 4x6 plane (per channel).
    choice = jax.random.randint(k_idx, (B, CIN, PH, PW), 0, 4)
    off = jnp.array([0, 1, UW, UW + 1], jnp.int32)[choice]
    base = (2 * jnp.arange(PH)[:, None]) * UW + 2 * jnp.arange(PW)[None, :]
    mp_indices = (base[None, None, :, :] + off).astype(jnp.int32)       # (B,3,2,3)

    fwd = jax.jit(cnn_decoder_forward_pallas)
    y_pallas = fwd(latent, mp_indices, params)
    jax.block_until_ready(y_pallas)

    y_ref = cnn_decoder_forward_ref(latent, mp_indices, params)
    jax.block_until_ready(y_ref)

    assert y_pallas.shape == (B, OH, OW, T)
    # Kernel matmuls use DEFAULT MXU precision (bf16 passes) per the perf
    # review, so the tolerance is slightly looser than the f32 round-off level.
    np.testing.assert_allclose(np.asarray(y_pallas), np.asarray(y_ref),
                               rtol=5e-3, atol=5e-3)
    print("KERNEL_OK")
</pallas_src>

<mosaic_0001>
module attributes {stable_mosaic.version = 11 : i64} {
  func.func @fused_decoder_kernel(%arg0: i32, %arg1: memref<2x8xf32, #tpu.memory_space<vmem>>, %arg2: memref<16x2xf32, #tpu.memory_space<vmem>>, %arg3: memref<8x32xf32, #tpu.memory_space<vmem>>, %arg4: memref<1x32xf32, #tpu.memory_space<vmem>>, %arg5: memref<2x32x128xf32, #tpu.memory_space<vmem>>, %arg6: memref<2x32x128xf32, #tpu.memory_space<vmem>>, %arg7: memref<2x1x128xf32, #tpu.memory_space<vmem>>, %arg8: memref<32x18xf32, #tpu.memory_space<vmem>>, %arg9: memref<1x18xf32, #tpu.memory_space<vmem>>, %arg10: memref<2x18x128xf32, #tpu.memory_space<vmem>>, %arg11: memref<1x128xf32, #tpu.memory_space<vmem>>, %arg12: memref<16x128xf32, #tpu.memory_space<vmem>>, %arg13: memref<16x32xf32, #tpu.memory_space<vmem>>, %arg14: memref<16x128xf32, #tpu.memory_space<vmem>>) attributes {dimension_semantics = [#tpu.dimension_semantics<arbitrary>], iteration_bounds = array<i64: 1>, scalar_prefetch = 0 : i64, scratch_operands = 2 : i64, tpu.core_type = #tpu.core_type<tc>, window_params = [{pipeline_mode = #tpu.pipeline_mode<synchronous>, transform_indices = @transform_0, window_bounds = array<i64: 2, 8>}, {pipeline_mode = #tpu.pipeline_mode<synchronous>, transform_indices = @transform_1, window_bounds = array<i64: 16, 2>}, {pipeline_mode = #tpu.pipeline_mode<synchronous>, transform_indices = @transform_2, window_bounds = array<i64: 8, 32>}, {pipeline_mode = #tpu.pipeline_mode<synchronous>, transform_indices = @transform_3, window_bounds = array<i64: 1, 32>}, {pipeline_mode = #tpu.pipeline_mode<synchronous>, transform_indices = @transform_4, window_bounds = array<i64: 2, 32, 128>}, {pipeline_mode = #tpu.pipeline_mode<synchronous>, transform_indices = @transform_5, window_bounds = array<i64: 2, 32, 128>}, {pipeline_mode = #tpu.pipeline_mode<synchronous>, transform_indices = @transform_6, window_bounds = array<i64: 2, 1, 128>}, {pipeline_mode = #tpu.pipeline_mode<synchronous>, transform_indices = @transform_7, window_bounds = array<i64: 32, 18>}, {pipeline_mode = #tpu.pipeline_mode<synchronous>, transform_indices = @transform_8, window_bounds = array<i64: 1, 18>}, {pipeline_mode = #tpu.pipeline_mode<synchronous>, transform_indices = @transform_9, window_bounds = array<i64: 2, 18, 128>}, {pipeline_mode = #tpu.pipeline_mode<synchronous>, transform_indices = @transform_10, window_bounds = array<i64: 1, 128>}, {pipeline_mode = #tpu.pipeline_mode<synchronous>, transform_indices = @transform_11, window_bounds = array<i64: 16, 128>}]} {
    %c0 = arith.constant 0 : index
    %c0_0 = arith.constant 0 : index
    %0 = vector.load %arg1[%c0, %c0_0] : memref<2x8xf32, #tpu.memory_space<vmem>>, vector<2x8xf32>
    %c0_1 = arith.constant 0 : index
    %c0_2 = arith.constant 0 : index
    %1 = vector.load %arg3[%c0_1, %c0_2] : memref<8x32xf32, #tpu.memory_space<vmem>>, vector<8x32xf32>
    %cst = arith.constant dense<0.000000e+00> : vector<2x32xf32>
    %2 = tpu.matmul %0, %1, %cst {dimension_numbers = #tpu.dot_dimension_numbers<[1], [0], [0], [1], [0, 0, 1, 1], [], []>} : vector<2x8xf32>, vector<8x32xf32>, vector<2x32xf32> -> vector<2x32xf32>
    %c0_3 = arith.constant 0 : index
    %c0_4 = arith.constant 0 : index
    %3 = vector.load %arg4[%c0_3, %c0_4] : memref<1x32xf32, #tpu.memory_space<vmem>>, vector<1x32xf32>
    %4 = vector.broadcast %3 : vector<1x32xf32> to vector<2x32xf32>
    %5 = arith.addf %2, %4 : vector<2x32xf32>
    %c0_5 = arith.constant 0 : index
    %c0_6 = arith.constant 0 : index
    %6 = vector.load %arg2[%c0_5, %c0_6] : memref<16x2xf32, #tpu.memory_space<vmem>>, vector<16x2xf32>
    %cst_7 = arith.constant dense<0.000000e+00> : vector<16x32xf32>
    %7 = tpu.matmul %6, %5, %cst_7 {dimension_numbers = #tpu.dot_dimension_numbers<[1], [0], [0], [1], [0, 0, 1, 1], [], []>} : vector<16x2xf32>, vector<2x32xf32>, vector<16x32xf32> -> vector<16x32xf32>
    %c0_8 = arith.constant 0 : index
    %c0_9 = arith.constant 0 : index
    %8 = vector.load %arg13[%c0_8, %c0_9] : memref<16x32xf32, #tpu.memory_space<vmem>>, vector<16x32xf32>
    tpu.vector_store %arg13[%c0_8, %c0_9], %7 {strides = array<i32>} : memref<16x32xf32, #tpu.memory_space<vmem>>, vector<16x32xf32>,
    %c0_10 = arith.constant 0 : index
    %c0_11 = arith.constant 0 : index
    %c0_12 = arith.constant 0 : index
    %9 = vector.load %arg5[%c0_10, %c0_11, %c0_12] : memref<2x32x128xf32, #tpu.memory_space<vmem>>, vector<1x32x128xf32>
    %10 = vector.shape_cast %9 : vector<1x32x128xf32> to vector<32x128xf32>
    %c0_13 = arith.constant 0 : index
    %c0_14 = arith.constant 0 : index
    %c0_15 = arith.constant 0 : index
    %11 = vector.load %arg6[%c0_13, %c0_14, %c0_15] : memref<2x32x128xf32, #tpu.memory_space<vmem>>, vector<1x32x128xf32>
    %12 = vector.shape_cast %11 : vector<1x32x128xf32> to vector<32x128xf32>
    %c0_16 = arith.constant 0 : index
    %c0_17 = arith.constant 0 : index
    %c0_18 = arith.constant 0 : index
    %13 = vector.load %arg7[%c0_16, %c0_17, %c0_18] : memref<2x1x128xf32, #tpu.memory_space<vmem>>, vector<1x1x128xf32>
    %14 = vector.shape_cast %13 : vector<1x1x128xf32> to vector<1x128xf32>
    %c0_19 = arith.constant 0 : index
    %c0_20 = arith.constant 0 : index
    %15 = vector.load %arg13[%c0_19, %c0_20] : memref<16x32xf32, #tpu.memory_space<vmem>>, vector<16x32xf32>
    %cst_21 = arith.constant dense<0.000000e+00> : vector<16x128xf32>
    %16 = tpu.matmul %15, %10, %cst_21 {dimension_numbers = #tpu.dot_dimension_numbers<[1], [0], [0], [1], [0, 0, 1, 1], [], []>} : vector<16x32xf32>, vector<32x128xf32>, vector<16x128xf32> -> vector<16x128xf32>
    %17 = vector.broadcast %14 : vector<1x128xf32> to vector<16x128xf32>
    %18 = arith.addf %16, %17 : vector<16x128xf32>
    %c0_22 = arith.constant 0 : index
    %c0_23 = arith.constant 0 : index
    %19 = vector.load %arg14[%c0_22, %c0_23] : memref<16x128xf32, #tpu.memory_space<vmem>>, vector<16x128xf32>
    tpu.vector_store %arg14[%c0_22, %c0_23], %18 {strides = array<i32>} : memref<16x128xf32, #tpu.memory_space<vmem>>, vector<16x128xf32>,
    %cst_24 = arith.constant 0.000000e+00 : f32
    %20 = vector.broadcast %cst_24 : f32 to vector<8x32xf32>
    %cst_25 = arith.constant 0.000000e+00 : f32
    %21 = vector.broadcast %cst_25 : f32 to vector<8x32xf32>
    %c0_26 = arith.constant 0 : index
    %c0_27 = arith.constant 0 : index
    %22 = vector.load %arg14[%c0_26, %c0_27] : memref<16x128xf32, #tpu.memory_space<vmem>>, vector<8x128xf32>
    %cst_28 = arith.constant dense<0.000000e+00> : vector<8x128xf32>
    %23 = tpu.matmul %20, %12, %cst_28 {dimension_numbers = #tpu.dot_dimension_numbers<[1], [0], [0], [1], [0, 0, 1, 1], [], []>} : vector<8x32xf32>, vector<32x128xf32>, vector<8x128xf32> -> vector<8x128xf32>
    %24 = arith.addf %22, %23 : vector<8x128xf32>
    %25 = arith.negf %24 : vector<8x128xf32>
    %26 = math.exp %25 : vector<8x128xf32>
    %cst_29 = arith.constant 1.000000e+00 : f32
    %27 = vector.broadcast %cst_29 : f32 to vector<8x128xf32>
    %28 = arith.addf %27, %26 : vector<8x128xf32>
    %29 = arith.divf %27, %28 : vector<8x128xf32>
    %30 = math.tanh %24 : vector<8x128xf32>
    %31 = vector.extract_strided_slice %29 {offsets = [0, 0], sizes = [8, 32], strides = [1, 1]} : vector<8x128xf32> to vector<8x32xf32>
    %32 = vector.extract_strided_slice %29 {offsets = [0, 32], sizes = [8, 32], strides = [1, 1]} : vector<8x128xf32> to vector<8x32xf32>
    %33 = vector.extract_strided_slice %30 {offsets = [0, 64], sizes = [8, 32], strides = [1, 1]} : vector<8x128xf32> to vector<8x32xf32>
    %34 = vector.extract_strided_slice %29 {offsets = [0, 96], sizes = [8, 32], strides = [1, 1]} : vector<8x128xf32> to vector<8x32xf32>
    %35 = arith.mulf %32, %21 : vector<8x32xf32>
    %36 = arith.mulf %31, %33 : vector<8x32xf32>
    %37 = arith.addf %35, %36 : vector<8x32xf32>
    %38 = math.tanh %37 : vector<8x32xf32>
    %39 = arith.mulf %34, %38 : vector<8x32xf32>
    %c0_30 = arith.constant 0 : index
    %c0_31 = arith.constant 0 : index
    %40 = vector.load %arg13[%c0_30, %c0_31] : memref<16x32xf32, #tpu.memory_space<vmem>>, vector<8x32xf32>
    tpu.vector_store %arg13[%c0_30, %c0_31], %39 {strides = array<i32>} : memref<16x32xf32, #tpu.memory_space<vmem>>, vector<8x32xf32>,
    %c8 = arith.constant 8 : index
    %c0_32 = arith.constant 0 : index
    %41 = vector.load %arg14[%c8, %c0_32] : memref<16x128xf32, #tpu.memory_space<vmem>>, vector<8x128xf32>
    %cst_33 = arith.constant dense<0.000000e+00> : vector<8x128xf32>
    %42 = tpu.matmul %39, %12, %cst_33 {dimension_numbers = #tpu.dot_dimension_numbers<[1], [0], [0], [1], [0, 0, 1, 1], [], []>} : vector<8x32xf32>, vector<32x128xf32>, vector<8x128xf32> -> vector<8x128xf32>
    %43 = arith.addf %41, %42 : vector<8x128xf32>
    %44 = arith.negf %43 : vector<8x128xf32>
    %45 = math.exp %44 : vector<8x128xf32>
    %cst_34 = arith.constant 1.000000e+00 : f32
    %46 = vector.broadcast %cst_34 : f32 to vector<8x128xf32>
    %47 = arith.addf %46, %45 : vector<8x128xf32>
    %48 = arith.divf %46, %47 : vector<8x128xf32>
    %49 = math.tanh %43 : vector<8x128xf32>
    %50 = vector.extract_strided_slice %48 {offsets = [0, 0], sizes = [8, 32], strides = [1, 1]} : vector<8x128xf32> to vector<8x32xf32>
    %51 = vector.extract_strided_slice %48 {offsets = [0, 32], sizes = [8, 32], strides = [1, 1]} : vector<8x128xf32> to vector<8x32xf32>
    %52 = vector.extract_strided_slice %49 {offsets = [0, 64], sizes = [8, 32], strides = [1, 1]} : vector<8x128xf32> to vector<8x32xf32>
    %53 = vector.extract_strided_slice %48 {offsets = [0, 96], sizes = [8, 32], strides = [1, 1]} : vector<8x128xf32> to vector<8x32xf32>
    %54 = arith.mulf %51, %37 : vector<8x32xf32>
    %55 = arith.mulf %50, %52 : vector<8x32xf32>
    %56 = arith.addf %54, %55 : vector<8x32xf32>
    %57 = math.tanh %56 : vector<8x32xf32>
    %58 = arith.mulf %53, %57 : vector<8x32xf32>
    %c8_35 = arith.constant 8 : index
    %c0_36 = arith.constant 0 : index
    %59 = vector.load %arg13[%c8_35, %c0_36] : memref<16x32xf32, #tpu.memory_space<vmem>>, vector<8x32xf32>
    tpu.vector_store %arg13[%c8_35, %c0_36], %58 {strides = array<i32>} : memref<16x32xf32, #tpu.memory_space<vmem>>, vector<8x32xf32>,
    %c1 = arith.constant 1 : index
    %c0_37 = arith.constant 0 : index
    %c0_38 = arith.constant 0 : index
    %60 = vector.load %arg5[%c1, %c0_37, %c0_38] : memref<2x32x128xf32, #tpu.memory_space<vmem>>, vector<1x32x128xf32>
    %61 = vector.shape_cast %60 : vector<1x32x128xf32> to vector<32x128xf32>
    %c1_39 = arith.constant 1 : index
    %c0_40 = arith.constant 0 : index
    %c0_41 = arith.constant 0 : index
    %62 = vector.load %arg6[%c1_39, %c0_40, %c0_41] : memref<2x32x128xf32, #tpu.memory_space<vmem>>, vector<1x32x128xf32>
    %63 = vector.shape_cast %62 : vector<1x32x128xf32> to vector<32x128xf32>
    %c1_42 = arith.constant 1 : index
    %c0_43 = arith.constant 0 : index
    %c0_44 = arith.constant 0 : index
    %64 = vector.load %arg7[%c1_42, %c0_43, %c0_44] : memref<2x1x128xf32, #tpu.memory_space<vmem>>, vector<1x1x128xf32>
    %65 = vector.shape_cast %64 : vector<1x1x128xf32> to vector<1x128xf32>
    %c0_45 = arith.constant 0 : index
    %c0_46 = arith.constant 0 : index
    %66 = vector.load %arg13[%c0_45, %c0_46] : memref<16x32xf32, #tpu.memory_space<vmem>>, vector<16x32xf32>
    %cst_47 = arith.constant dense<0.000000e+00> : vector<16x128xf32>
    %67 = tpu.matmul %66, %61, %cst_47 {dimension_numbers = #tpu.dot_dimension_numbers<[1], [0], [0], [1], [0, 0, 1, 1], [], []>} : vector<16x32xf32>, vector<32x128xf32>, vector<16x128xf32> -> vector<16x128xf32>
    %68 = vector.broadcast %65 : vector<1x128xf32> to vector<16x128xf32>
    %69 = arith.addf %67, %68 : vector<16x128xf32>
    %c0_48 = arith.constant 0 : index
    %c0_49 = arith.constant 0 : index
    %70 = vector.load %arg14[%c0_48, %c0_49] : memref<16x128xf32, #tpu.memory_space<vmem>>, vector<16x128xf32>
    tpu.vector_store %arg14[%c0_48, %c0_49], %69 {strides = array<i32>} : memref<16x128xf32, #tpu.memory_space<vmem>>, vector<16x128xf32>,
    %cst_50 = arith.constant 0.000000e+00 : f32
    %71 = vector.broadcast %cst_50 : f32 to vector<8x32xf32>
    %cst_51 = arith.constant 0.000000e+00 : f32
    %72 = vector.broadcast %cst_51 : f32 to vector<8x32xf32>
    %c0_52 = arith.constant 0 : index
    %c0_53 = arith.constant 0 : index
    %73 = vector.load %arg14[%c0_52, %c0_53] : memref<16x128xf32, #tpu.memory_space<vmem>>, vector<8x128xf32>
    %cst_54 = arith.constant dense<0.000000e+00> : vector<8x128xf32>
    %74 = tpu.matmul %71, %63, %cst_54 {dimension_numbers = #tpu.dot_dimension_numbers<[1], [0], [0], [1], [0, 0, 1, 1], [], []>} : vector<8x32xf32>, vector<32x128xf32>, vector<8x128xf32> -> vector<8x128xf32>
    %75 = arith.addf %73, %74 : vector<8x128xf32>
    %76 = arith.negf %75 : vector<8x128xf32>
    %77 = math.exp %76 : vector<8x128xf32>
    %cst_55 = arith.constant 1.000000e+00 : f32
    %78 = vector.broadcast %cst_55 : f32 to vector<8x128xf32>
    %79 = arith.addf %78, %77 : vector<8x128xf32>
    %80 = arith.divf %78, %79 : vector<8x128xf32>
    %81 = math.tanh %75 : vector<8x128xf32>
    %82 = vector.extract_strided_slice %80 {offsets = [0, 0], sizes = [8, 32], strides = [1, 1]} : vector<8x128xf32> to vector<8x32xf32>
    %83 = vector.extract_strided_slice %80 {offsets = [0, 32], sizes = [8, 32], strides = [1, 1]} : vector<8x128xf32> to vector<8x32xf32>
    %84 = vector.extract_strided_slice %81 {offsets = [0, 64], sizes = [8, 32], strides = [1, 1]} : vector<8x128xf32> to vector<8x32xf32>
    %85 = vector.extract_strided_slice %80 {offsets = [0, 96], sizes = [8, 32], strides = [1, 1]} : vector<8x128xf32> to vector<8x32xf32>
    %86 = arith.mulf %83, %72 : vector<8x32xf32>
    %87 = arith.mulf %82, %84 : vector<8x32xf32>
    %88 = arith.addf %86, %87 : vector<8x32xf32>
    %89 = math.tanh %88 : vector<8x32xf32>
    %90 = arith.mulf %85, %89 : vector<8x32xf32>
    %c0_56 = arith.constant 0 : index
    %c0_57 = arith.constant 0 : index
    %91 = vector.load %arg13[%c0_56, %c0_57] : memref<16x32xf32, #tpu.memory_space<vmem>>, vector<8x32xf32>
    tpu.vector_store %arg13[%c0_56, %c0_57], %90 {strides = array<i32>} : memref<16x32xf32, #tpu.memory_space<vmem>>, vector<8x32xf32>,
    %c8_58 = arith.constant 8 : index
    %c0_59 = arith.constant 0 : index
    %92 = vector.load %arg14[%c8_58, %c0_59] : memref<16x128xf32, #tpu.memory_space<vmem>>, vector<8x128xf32>
    %cst_60 = arith.constant dense<0.000000e+00> : vector<8x128xf32>
    %93 = tpu.matmul %90, %63, %cst_60 {dimension_numbers = #tpu.dot_dimension_numbers<[1], [0], [0], [1], [0, 0, 1, 1], [], []>} : vector<8x32xf32>, vector<32x128xf32>, vector<8x128xf32> -> vector<8x128xf32>
    %94 = arith.addf %92, %93 : vector<8x128xf32>
    %95 = arith.negf %94 : vector<8x128xf32>
    %96 = math.exp %95 : vector<8x128xf32>
    %cst_61 = arith.constant 1.000000e+00 : f32
    %97 = vector.broadcast %cst_61 : f32 to vector<8x128xf32>
    %98 = arith.addf %97, %96 : vector<8x128xf32>
    %99 = arith.divf %97, %98 : vector<8x128xf32>
    %100 = math.tanh %94 : vector<8x128xf32>
    %101 = vector.extract_strided_slice %99 {offsets = [0, 0], sizes = [8, 32], strides = [1, 1]} : vector<8x128xf32> to vector<8x32xf32>
    %102 = vector.extract_strided_slice %99 {offsets = [0, 32], sizes = [8, 32], strides = [1, 1]} : vector<8x128xf32> to vector<8x32xf32>
    %103 = vector.extract_strided_slice %100 {offsets = [0, 64], sizes = [8, 32], strides = [1, 1]} : vector<8x128xf32> to vector<8x32xf32>
    %104 = vector.extract_strided_slice %99 {offsets = [0, 96], sizes = [8, 32], strides = [1, 1]} : vector<8x128xf32> to vector<8x32xf32>
    %105 = arith.mulf %102, %88 : vector<8x32xf32>
    %106 = arith.mulf %101, %103 : vector<8x32xf32>
    %107 = arith.addf %105, %106 : vector<8x32xf32>
    %108 = math.tanh %107 : vector<8x32xf32>
    %109 = arith.mulf %104, %108 : vector<8x32xf32>
    %c8_62 = arith.constant 8 : index
    %c0_63 = arith.constant 0 : index
    %110 = vector.load %arg13[%c8_62, %c0_63] : memref<16x32xf32, #tpu.memory_space<vmem>>, vector<8x32xf32>
    tpu.vector_store %arg13[%c8_62, %c0_63], %109 {strides = array<i32>} : memref<16x32xf32, #tpu.memory_space<vmem>>, vector<8x32xf32>,
    %c0_64 = arith.constant 0 : index
    %c0_65 = arith.constant 0 : index
    %111 = vector.load %arg13[%c0_64, %c0_65] : memref<16x32xf32, #tpu.memory_space<vmem>>, vector<8x32xf32>
    %c0_66 = arith.constant 0 : index
    %c0_67 = arith.constant 0 : index
    %112 = vector.load %arg8[%c0_66, %c0_67] : memref<32x18xf32, #tpu.memory_space<vmem>>, vector<32x18xf32>
    %cst_68 = arith.constant dense<0.000000e+00> : vector<8x18xf32>
    %113 = tpu.matmul %111, %112, %cst_68 {dimension_numbers = #tpu.dot_dimension_numbers<[1], [0], [0], [1], [0, 0, 1, 1], [], []>} : vector<8x32xf32>, vector<32x18xf32>, vector<8x18xf32> -> vector<8x18xf32>
    %c0_69 = arith.constant 0 : index
    %c0_70 = arith.constant 0 : index
    %114 = vector.load %arg9[%c0_69, %c0_70] : memref<1x18xf32, #tpu.memory_space<vmem>>, vector<1x18xf32>
    %115 = vector.broadcast %114 : vector<1x18xf32> to vector<8x18xf32>
    %116 = arith.addf %113, %115 : vector<8x18xf32>
    %c0_71 = arith.constant 0 : index
    %c0_72 = arith.constant 0 : index
    %c0_73 = arith.constant 0 : index
    %117 = vector.load %arg10[%c0_71, %c0_72, %c0_73] : memref<2x18x128xf32, #tpu.memory_space<vmem>>, vector<1x18x128xf32>
    %118 = vector.shape_cast %117 : vector<1x18x128xf32> to vector<18x128xf32>
    %cst_74 = arith.constant dense<0.000000e+00> : vector<8x128xf32>
    %119 = tpu.matmul %116, %118, %cst_74 {dimension_numbers = #tpu.dot_dimension_numbers<[1], [0], [0], [1], [0, 0, 1, 1], [], []>} : vector<8x18xf32>, vector<18x128xf32>, vector<8x128xf32> -> vector<8x128xf32>
    %c0_75 = arith.constant 0 : index
    %c0_76 = arith.constant 0 : index
    %120 = vector.load %arg11[%c0_75, %c0_76] : memref<1x128xf32, #tpu.memory_space<vmem>>, vector<1x128xf32>
    %121 = vector.broadcast %120 : vector<1x128xf32> to vector<8x128xf32>
    %122 = arith.addf %119, %121 : vector<8x128xf32>
    %cst_77 = arith.constant 0.000000e+00 : f32
    %123 = vector.broadcast %cst_77 : f32 to vector<8x128xf32>
    %124 = arith.maximumf %122, %123 : vector<8x128xf32>
    %c0_78 = arith.constant 0 : index
    %c0_79 = arith.constant 0 : index
    %125 = vector.load %arg12[%c0_78, %c0_79] : memref<16x128xf32, #tpu.memory_space<vmem>>, vector<8x128xf32>
    tpu.vector_store %arg12[%c0_78, %c0_79], %124 {strides = array<i32>} : memref<16x128xf32, #tpu.memory_space<vmem>>, vector<8x128xf32>,
    %c8_80 = arith.constant 8 : index
    %c0_81 = arith.constant 0 : index
    %126 = vector.load %arg13[%c8_80, %c0_81] : memref<16x32xf32, #tpu.memory_space<vmem>>, vector<8x32xf32>
    %c0_82 = arith.constant 0 : index
    %c0_83 = arith.constant 0 : index
    %127 = vector.load %arg8[%c0_82, %c0_83] : memref<32x18xf32, #tpu.memory_space<vmem>>, vector<32x18xf32>
    %cst_84 = arith.constant dense<0.000000e+00> : vector<8x18xf32>
    %128 = tpu.matmul %126, %127, %cst_84 {dimension_numbers = #tpu.dot_dimension_numbers<[1], [0], [0], [1], [0, 0, 1, 1], [], []>} : vector<8x32xf32>, vector<32x18xf32>, vector<8x18xf32> -> vector<8x18xf32>
    %c0_85 = arith.constant 0 : index
    %c0_86 = arith.constant 0 : index
    %129 = vector.load %arg9[%c0_85, %c0_86] : memref<1x18xf32, #tpu.memory_space<vmem>>, vector<1x18xf32>
    %130 = vector.broadcast %129 : vector<1x18xf32> to vector<8x18xf32>
    %131 = arith.addf %128, %130 : vector<8x18xf32>
    %c1_87 = arith.constant 1 : index
    %c0_88 = arith.constant 0 : index
    %c0_89 = arith.constant 0 : index
    %132 = vector.load %arg10[%c1_87, %c0_88, %c0_89] : memref<2x18x128xf32, #tpu.memory_space<vmem>>, vector<1x18x128xf32>
    %133 = vector.shape_cast %132 : vector<1x18x128xf32> to vector<18x128xf32>
    %cst_90 = arith.constant dense<0.000000e+00> : vector<8x128xf32>
    %134 = tpu.matmul %131, %133, %cst_90 {dimension_numbers = #tpu.dot_dimension_numbers<[1], [0], [0], [1], [0, 0, 1, 1], [], []>} : vector<8x18xf32>, vector<18x128xf32>, vector<8x128xf32> -> vector<8x128xf32>
    %c0_91 = arith.constant 0 : index
    %c0_92 = arith.constant 0 : index
    %135 = vector.load %arg11[%c0_91, %c0_92] : memref<1x128xf32, #tpu.memory_space<vmem>>, vector<1x128xf32>
    %136 = vector.broadcast %135 : vector<1x128xf32> to vector<8x128xf32>
    %137 = arith.addf %134, %136 : vector<8x128xf32>
    %cst_93 = arith.constant 0.000000e+00 : f32
    %138 = vector.broadcast %cst_93 : f32 to vector<8x128xf32>
    %139 = arith.maximumf %137, %138 : vector<8x128xf32>
    %c8_94 = arith.constant 8 : index
    %c0_95 = arith.constant 0 : index
    %140 = vector.load %arg12[%c8_94, %c0_95] : memref<16x128xf32, #tpu.memory_space<vmem>>, vector<8x128xf32>
    tpu.vector_store %arg12[%c8_94, %c0_95], %139 {strides = array<i32>} : memref<16x128xf32, #tpu.memory_space<vmem>>, vector<8x128xf32>,
    return
  }
  func.func @transform_0(%arg0: i32) -> (i32, i32) {
    %c0_i32 = arith.constant 0 : i32
    %c0_i32_0 = arith.constant 0 : i32
    %c0_i32_1 = arith.constant 0 : i32
    return %c0_i32, %c0_i32_0 : i32, i32
  }
  func.func @transform_1(%arg0: i32) -> (i32, i32) {
    %c0_i32 = arith.constant 0 : i32
    %c0_i32_0 = arith.constant 0 : i32
    %c0_i32_1 = arith.constant 0 : i32
    return %c0_i32, %c0_i32_0 : i32, i32
  }
  func.func @transform_2(%arg0: i32) -> (i32, i32) {
    %c0_i32 = arith.constant 0 : i32
    %c0_i32_0 = arith.constant 0 : i32
    %c0_i32_1 = arith.constant 0 : i32
    return %c0_i32, %c0_i32_0 : i32, i32
  }
  func.func @transform_3(%arg0: i32) -> (i32, i32) {
    %c0_i32 = arith.constant 0 : i32
    %c0_i32_0 = arith.constant 0 : i32
    %c0_i32_1 = arith.constant 0 : i32
    return %c0_i32, %c0_i32_0 : i32, i32
  }
  func.func @transform_4(%arg0: i32) -> (i32, i32, i32) {
    %c0_i32 = arith.constant 0 : i32
    %c0_i32_0 = arith.constant 0 : i32
    %c0_i32_1 = arith.constant 0 : i32
    %c0_i32_2 = arith.constant 0 : i32
    return %c0_i32, %c0_i32_0, %c0_i32_1 : i32, i32, i32
  }
  func.func @transform_5(%arg0: i32) -> (i32, i32, i32) {
    %c0_i32 = arith.constant 0 : i32
    %c0_i32_0 = arith.constant 0 : i32
    %c0_i32_1 = arith.constant 0 : i32
    %c0_i32_2 = arith.constant 0 : i32
    return %c0_i32, %c0_i32_0, %c0_i32_1 : i32, i32, i32
  }
  func.func @transform_6(%arg0: i32) -> (i32, i32, i32) {
    %c0_i32 = arith.constant 0 : i32
    %c0_i32_0 = arith.constant 0 : i32
    %c0_i32_1 = arith.constant 0 : i32
    %c0_i32_2 = arith.constant 0 : i32
    return %c0_i32, %c0_i32_0, %c0_i32_1 : i32, i32, i32
  }
  func.func @transform_7(%arg0: i32) -> (i32, i32) {
    %c0_i32 = arith.constant 0 : i32
    %c0_i32_0 = arith.constant 0 : i32
    %c0_i32_1 = arith.constant 0 : i32
    return %c0_i32, %c0_i32_0 : i32, i32
  }
  func.func @transform_8(%arg0: i32) -> (i32, i32) {
    %c0_i32 = arith.constant 0 : i32
    %c0_i32_0 = arith.constant 0 : i32
    %c0_i32_1 = arith.constant 0 : i32
    return %c0_i32, %c0_i32_0 : i32, i32
  }
  func.func @transform_9(%arg0: i32) -> (i32, i32, i32) {
    %c0_i32 = arith.constant 0 : i32
    %c0_i32_0 = arith.constant 0 : i32
    %c0_i32_1 = arith.constant 0 : i32
    %c0_i32_2 = arith.constant 0 : i32
    return %c0_i32, %c0_i32_0, %c0_i32_1 : i32, i32, i32
  }
  func.func @transform_10(%arg0: i32) -> (i32, i32) {
    %c0_i32 = arith.constant 0 : i32
    %c0_i32_0 = arith.constant 0 : i32
    %c0_i32_1 = arith.constant 0 : i32
    return %c0_i32, %c0_i32_0 : i32, i32
  }
  func.func @transform_11(%arg0: i32) -> (i32, i32) {
    %c0_i32 = arith.constant 0 : i32
    %c0_i32_0 = arith.constant 0 : i32
    %c0_i32_1 = arith.constant 0 : i32
    return %c0_i32, %c0_i32_0 : i32, i32
  }
}

</mosaic_0001>

<llo_original>
// kernel: cnn_decoder_forward_pallas.1
$region0: #{cnn_decoder_forward_pallas.1}
  #allocation0 [shape = 'u32[]', space=smem, size = 0x4, offset = 0x4, fixed_abs, tag = 'smem constant byte address 0x4 - core index']
  #allocation1 [shape = 'u32[144,128]{1,0:T(1,128)}', space=vmem, size = 0x12000, scoped, tag = 'internal scratch']
  #allocation2 [shape = 'f32[16,32]{1,0:T(8,128)}', space=vmem, size = 0x2000, scoped, tag = 'scratch operand']
  #allocation3 [shape = 'f32[16,128]{1,0:T(8,128)}', space=vmem, size = 0x2000, scoped, tag = 'scratch operand']
  %s0 = inlined_call_operand.vmem [shape: f32[2,8], index: 0, kind: input, shape index: {}]
  %s1 = inlined_call_operand.vmem [shape: f32[16,2], index: 1, kind: input, shape index: {}]
  %s2 = inlined_call_operand.vmem [shape: f32[8,32], index: 2, kind: input, shape index: {}]
  %s3 = inlined_call_operand.vmem [shape: f32[1,32], index: 3, kind: input, shape index: {}]
  %s4 = inlined_call_operand.vmem [shape: f32[2,32,128], index: 4, kind: input, shape index: {}]
  %s5 = inlined_call_operand.vmem [shape: f32[2,32,128], index: 5, kind: input, shape index: {}]
  %s6 = inlined_call_operand.vmem [shape: f32[2,1,128], index: 6, kind: input, shape index: {}]
  %s7 = inlined_call_operand.vmem [shape: f32[32,18], index: 7, kind: input, shape index: {}]
  %s8 = inlined_call_operand.vmem [shape: f32[1,18], index: 8, kind: input, shape index: {}]
  %s9 = inlined_call_operand.vmem [shape: f32[2,18,128], index: 9, kind: input, shape index: {}]
  %s10 = inlined_call_operand.vmem [shape: f32[1,128], index: 10, kind: input, shape index: {}]
  %s11 = inlined_call_operand.vmem [shape: f32[16,128], index: 11, kind: output, shape index: {}]
  %s12 = sld [smem:[#allocation0]]
  $region54: #{cnn_decoder_forward_pallas.1} parent=0
    _
  %s14 = ssub.s32 1, %s12
  %s15 = scalar_select 0, %s14, %s12
  // Predicated region
  $region2: #{cnn_decoder_forward_pallas.1} parent=0 // pred_check
    _
  $region3: #{cnn_decoder_forward_pallas.1} parent=0 // pred_check_branch
    %17 = sbr.rel (0) target = $region5
  $region4: #{cnn_decoder_forward_pallas.1} parent=0 // pred_region
    _
  $region5: #{cnn_decoder_forward_pallas.1} parent=0 // pred_fallthru
    _
  // Predicated region
  $region6: #{cnn_decoder_forward_pallas.1} parent=0 // pred_check
    _
  $region7: #{cnn_decoder_forward_pallas.1} parent=0 // pred_check_branch
    %19 = sbr.rel (0) target = $region9
  $region8: #{cnn_decoder_forward_pallas.1} parent=0 // pred_region
    _
  $region9: #{cnn_decoder_forward_pallas.1} parent=0 // pred_fallthru
    _
  // Predicated region
  $region10: #{cnn_decoder_forward_pallas.1} parent=0 // pred_check
    _
  $region11: #{cnn_decoder_forward_pallas.1} parent=0 // pred_check_branch
    %21 = sbr.rel (0) target = $region13
  $region12: #{cnn_decoder_forward_pallas.1} parent=0 // pred_region
    _
  $region13: #{cnn_decoder_forward_pallas.1} parent=0 // pred_fallthru
    _
  // Predicated region
  $region14: #{cnn_decoder_forward_pallas.1} parent=0 // pred_check
    _
  $region15: #{cnn_decoder_forward_pallas.1} parent=0 // pred_check_branch
    %23 = sbr.rel (0) target = $region17
  $region16: #{cnn_decoder_forward_pallas.1} parent=0 // pred_region
    _
  $region17: #{cnn_decoder_forward_pallas.1} parent=0 // pred_fallthru
    _
  // Predicated region
  $region18: #{cnn_decoder_forward_pallas.1} parent=0 // pred_check
    _
  $region19: #{cnn_decoder_forward_pallas.1} parent=0 // pred_check_branch
    %25 = sbr.rel (0) target = $region21
  $region20: #{cnn_decoder_forward_pallas.1} parent=0 // pred_region
    _
  $region21: #{cnn_decoder_forward_pallas.1} parent=0 // pred_fallthru
    _
  // Predicated region
  $region22: #{cnn_decoder_forward_pallas.1} parent=0 // pred_check
    _
  $region23: #{cnn_decoder_forward_pallas.1} parent=0 // pred_check_branch
    %27 = sbr.rel (0) target = $region25
  $region24: #{cnn_decoder_forward_pallas.1} parent=0 // pred_region
    _
  $region25: #{cnn_decoder_forward_pallas.1} parent=0 // pred_fallthru
    _
  // Predicated region
  $region26: #{cnn_decoder_forward_pallas.1} parent=0 // pred_check
    _
  $region27: #{cnn_decoder_forward_pallas.1} parent=0 // pred_check_branch
    %29 = sbr.rel (0) target = $region29
  $region28: #{cnn_decoder_forward_pallas.1} parent=0 // pred_region
    _
  $region29: #{cnn_decoder_forward_pallas.1} parent=0 // pred_fallthru
    _
  // Predicated region
  $region30: #{cnn_decoder_forward_pallas.1} parent=0 // pred_check
    _
  $region31: #{cnn_decoder_forward_pallas.1} parent=0 // pred_check_branch
    %31 = sbr.rel (0) target = $region33
  $region32: #{cnn_decoder_forward_pallas.1} parent=0 // pred_region
    _
  $region33: #{cnn_decoder_forward_pallas.1} parent=0 // pred_fallthru
    _
  // Predicated region
  $region34: #{cnn_decoder_forward_pallas.1} parent=0 // pred_check
    _
  $region35: #{cnn_decoder_forward_pallas.1} parent=0 // pred_check_branch
    %33 = sbr.rel (0) target = $region37
  $region36: #{cnn_decoder_forward_pallas.1} parent=0 // pred_region
    _
  $region37: #{cnn_decoder_forward_pallas.1} parent=0 // pred_fallthru
    _
  // Predicated region
  $region38: #{cnn_decoder_forward_pallas.1} parent=0 // pred_check
    _
  $region39: #{cnn_decoder_forward_pallas.1} parent=0 // pred_check_branch
    %35 = sbr.rel (0) target = $region41
  $region40: #{cnn_decoder_forward_pallas.1} parent=0 // pred_region
    _
  $region41: #{cnn_decoder_forward_pallas.1} parent=0 // pred_fallthru
    _
  // Predicated region
  $region42: #{cnn_decoder_forward_pallas.1} parent=0 // pred_check
    _
  $region43: #{cnn_decoder_forward_pallas.1} parent=0 // pred_check_branch
    %37 = sbr.rel (0) target = $region45
  $region44: #{cnn_decoder_forward_pallas.1} parent=0 // pred_region
    _
  $region45: #{cnn_decoder_forward_pallas.1} parent=0 // pred_fallthru
    _
  %v38 = vld [vmem:[%s0] sm:$0x3]
  %v39 = vld [vmem:[%s2] sm:$0xff]
  %v40 = vld [vmem:[%s3] sm:$0x1]
  %v42 = vlaneseq
  %v43 = vshrl.u32 %v42, 7
  %v44 = vsub.s32 0, %v43
  %v45 = vrot.slane %v40, %v44
  %vm47 = vcmask 64512
  %v49 = vsel %vm47, %v38, 0
  %51 = vmatprep.subr.mxu0 0.0
  %52 = vmatpush1.msra.mxu0 0.0
  %53 = vmatprep.subr.mxu0 0.0
  %54 = vmatpush1.msra.mxu0 0.0
  %55 = vmatprep.subr.mxu0 0.0
  %56 = vmatpush1.msra.mxu0 0.0
  %57 = vmatprep.subr.mxu0 0.0
  %58 = vmatpush1.msra.mxu0 0.0
  %59 = vmatprep.subr.mxu0 0.0
  %60 = vmatpush1.msra.mxu0 0.0
  %61 = vmatprep.subr.mxu0 0.0
  %62 = vmatpush1.msra.mxu0 0.0
  %63 = vmatprep.subr.mxu0 0.0
  %64 = vmatpush1.msra.mxu0 0.0
  %65 = vmatprep.subr.mxu0 0.0
  %66 = vmatpush1.msra.mxu0 0.0
  %67 = vmatprep.subr.mxu0 0.0
  %68 = vmatpush1.msra.mxu0 0.0
  %69 = vmatprep.subr.mxu0 0.0
  %70 = vmatpush1.msra.mxu0 0.0
  %71 = vmatprep.subr.mxu0 0.0
  %72 = vmatpush1.msra.mxu0 0.0
  %73 = vmatprep.subr.mxu0 0.0
  %74 = vmatpush1.msra.mxu0 0.0
  %75 = vmatprep.subr.mxu0 0.0
  %76 = vmatpush1.msra.mxu0 0.0
  %77 = vmatprep.subr.mxu0 0.0
  %78 = vmatpush1.msra.mxu0 0.0
  %79 = vmatprep.subr.mxu0 0.0
  %80 = vmatpush1.msra.mxu0 0.0
  %81 = vmatprep.subr.mxu0 0.0
  %82 = vmatpush1.msra.mxu0 %v39
  %83 = vmatprep.subr.mxu0 0.0
  %84 = vmatpush2.msra.mxu0 0.0
  %85 = vmatprep.subr.mxu0 0.0
  %86 = vmatpush2.msra.mxu0 0.0
  %87 = vmatprep.subr.mxu0 0.0
  %88 = vmatpush2.msra.mxu0 0.0
  %89 = vmatprep.subr.mxu0 0.0
  %90 = vmatpush2.msra.mxu0 0.0
  %91 = vmatprep.subr.mxu0 0.0
  %92 = vmatpush2.msra.mxu0 0.0
  %93 = vmatprep.subr.mxu0 0.0
  %94 = vmatpush2.msra.mxu0 0.0
  %95 = vmatprep.subr.mxu0 0.0
  %96 = vmatpush2.msra.mxu0 0.0
  %97 = vmatprep.subr.mxu0 0.0
  %98 = vmatpush2.msra.mxu0 0.0
  %99 = vmatprep.subr.mxu0 0.0
  %100 = vmatpush2.msra.mxu0 0.0
  %101 = vmatprep.subr.mxu0 0.0
  %102 = vmatpush2.msra.mxu0 0.0
  %103 = vmatprep.subr.mxu0 0.0
  %104 = vmatpush2.msra.mxu0 0.0
  %105 = vmatprep.subr.mxu0 0.0
  %106 = vmatpush2.msra.mxu0 0.0
  %107 = vmatprep.subr.mxu0 0.0
  %108 = vmatpush2.msra.mxu0 0.0
  %109 = vmatprep.subr.mxu0 0.0
  %110 = vmatpush2.msra.mxu0 0.0
  %111 = vmatprep.subr.mxu0 0.0
  %112 = vmatpush2.msra.mxu0 0.0
  %113 = vmatprep.subr.mxu0 0.0
  %114 = vmatpush2.msra.mxu0 0.0
  %115 = vmatprep.mubr.f32.mxu0 0.0
  %116 = vmatmul.mubr.f32.gmra.mxu0 %v49
  %v117 = vpop.f32.mrf.mxu0
  %v118 = vadd.f32 %v45, %v117
  %v119 = vpop.f32.mrf.mxu0
  %120 = vdwg.mxu0
  %v121 = vld [vmem:[%s1] sm:$0xff]
  %v122 = vld [vmem:[%s1 + $0x8] sm:$0xff]
  %vm123 = vcmask 15360
  %v125 = vsel %vm123, %v121, 0
  %v128 = vsel %vm123, %v122, 0
  %vm130 = vcmask 1041408
  %v132 = vsel %vm130, %v118, 0
  %134 = vmatprep.subr.mxu0 0.0
  %135 = vmatpush1.msra.mxu0 0.0
  %136 = vmatprep.subr.mxu0 0.0
  %137 = vmatpush1.msra.mxu0 0.0
  %138 = vmatprep.subr.mxu0 0.0
  %139 = vmatpush1.msra.mxu0 0.0
  %140 = vmatprep.subr.mxu0 0.0
  %141 = vmatpush1.msra.mxu0 0.0
  %142 = vmatprep.subr.mxu0 0.0
  %143 = vmatpush1.msra.mxu0 0.0
  %144 = vmatprep.subr.mxu0 0.0
  %145 = vmatpush1.msra.mxu0 0.0
  %146 = vmatprep.subr.mxu0 0.0
  %147 = vmatpush1.msra.mxu0 0.0
  %148 = vmatprep.subr.mxu0 0.0
  %149 = vmatpush1.msra.mxu0 0.0
  %150 = vmatprep.subr.mxu0 0.0
  %151 = vmatpush1.msra.mxu0 0.0
  %152 = vmatprep.subr.mxu0 0.0
  %153 = vmatpush1.msra.mxu0 0.0
  %154 = vmatprep.subr.mxu0 0.0
  %155 = vmatpush1.msra.mxu0 0.0
  %156 = vmatprep.subr.mxu0 0.0
  %157 = vmatpush1.msra.mxu0 0.0
  %158 = vmatprep.subr.mxu0 0.0
  %159 = vmatpush1.msra.mxu0 0.0
  %160 = vmatprep.subr.mxu0 0.0
  %161 = vmatpush1.msra.mxu0 0.0
  %162 = vmatprep.subr.mxu0 0.0
  %163 = vmatpush1.msra.mxu0 0.0
  %164 = vmatprep.subr.mxu0 0.0
  %165 = vmatpush1.msra.mxu0 %v132
  %166 = vmatprep.subr.mxu0 0.0
  %167 = vmatpush2.msra.mxu0 0.0
  %168 = vmatprep.subr.mxu0 0.0
  %169 = vmatpush2.msra.mxu0 0.0
  %170 = vmatprep.subr.mxu0 0.0
  %171 = vmatpush2.msra.mxu0 0.0
  %172 = vmatprep.subr.mxu0 0.0
  %173 = vmatpush2.msra.mxu0 0.0
  %174 = vmatprep.subr.mxu0 0.0
  %175 = vmatpush2.msra.mxu0 0.0
  %176 = vmatprep.subr.mxu0 0.0
  %177 = vmatpush2.msra.mxu0 0.0
  %178 = vmatprep.subr.mxu0 0.0
  %179 = vmatpush2.msra.mxu0 0.0
  %180 = vmatprep.subr.mxu0 0.0
  %181 = vmatpush2.msra.mxu0 0.0
  %182 = vmatprep.subr.mxu0 0.0
  %183 = vmatpush2.msra.mxu0 0.0
  %184 = vmatprep.subr.mxu0 0.0
  %185 = vmatpush2.msra.mxu0 0.0
  %186 = vmatprep.subr.mxu0 0.0
  %187 = vmatpush2.msra.mxu0 0.0
  %188 = vmatprep.subr.mxu0 0.0
  %189 = vmatpush2.msra.mxu0 0.0
  %190 = vmatprep.subr.mxu0 0.0
  %191 = vmatpush2.msra.mxu0 0.0
  %192 = vmatprep.subr.mxu0 0.0
  %193 = vmatpush2.msra.mxu0 0.0
  %194 = vmatprep.subr.mxu0 0.0
  %195 = vmatpush2.msra.mxu0 0.0
  %196 = vmatprep.subr.mxu0 0.0
  %197 = vmatpush2.msra.mxu0 0.0
  %198 = vmatprep.mubr.f32.mxu0 0.0
  %199 = vmatmul.mubr.f32.gmra.mxu0 %v125
  %v200 = vpop.f32.mrf.mxu0
  %v201 = vadd.f32 0.0, %v200
  %v202 = vpop.f32.mrf.mxu0
  %203 = vmatprep.mubr.f32.mxu0 0.0
  %204 = vmatmul.mubr.f32.gmra.mxu0 %v128
  %v205 = vpop.f32.mrf.mxu0
  %v206 = vadd.f32 0.0, %v205
  %v207 = vpop.f32.mrf.mxu0
  %208 = vdwg.mxu0
  %vm209 = vcmask 261120
  %210 = vst.msk [vmem:[#allocation2] sm:$0xff] %vm209, %v201
  %211 = vst.msk [vmem:[#allocation2 + $0x8] sm:$0xff] %vm209, %v206
  %v212 = vld [vmem:[%s4] sm:$0xff]
  %v213 = vld [vmem:[%s4 + $0x8] sm:$0xff]
  %v214 = vld [vmem:[%s4 + $0x10] sm:$0xff]
  %v215 = vld [vmem:[%s4 + $0x18] sm:$0xff]
  %v216 = vld [vmem:[%s5] sm:$0xff]
  %v217 = vld [vmem:[%s5 + $0x8] sm:$0xff]
  %v218 = vld [vmem:[%s5 + $0x10] sm:$0xff]
  %v219 = vld [vmem:[%s5 + $0x18] sm:$0xff]
  %v220 = vld [vmem:[%s6] sm:$0x1]
  %v221 = vld [vmem:[#allocation2] sm:$0xff]
  %v222 = vld [vmem:[#allocation2 + $0x8] sm:$0xff]
  %v224 = vlaneseq
  %v225 = vshrl.u32 %v224, 7
  %v226 = vsub.s32 0, %v225
  %v227 = vrot.slane %v220, %v226
  %v230 = vsel %vm209, %v221, 0
  %v233 = vsel %vm209, %v222, 0
  %235 = vmatprep.subr.mxu0 0.0
  %236 = vmatpush1.msra.mxu0 0.0
  %237 = vmatprep.subr.mxu0 0.0
  %238 = vmatpush1.msra.mxu0 0.0
  %239 = vmatprep.subr.mxu0 0.0
  %240 = vmatpush1.msra.mxu0 0.0
  %241 = vmatprep.subr.mxu0 0.0
  %242 = vmatpush1.msra.mxu0 0.0
  %243 = vmatprep.subr.mxu0 0.0
  %244 = vmatpush1.msra.mxu0 0.0
  %245 = vmatprep.subr.mxu0 0.0
  %246 = vmatpush1.msra.mxu0 0.0
  %247 = vmatprep.subr.mxu0 0.0
  %248 = vmatpush1.msra.mxu0 0.0
  %249 = vmatprep.subr.mxu0 0.0
  %250 = vmatpush1.msra.mxu0 0.0
  %251 = vmatprep.subr.mxu0 0.0
  %252 = vmatpush1.msra.mxu0 0.0
  %253 = vmatprep.subr.mxu0 0.0
  %254 = vmatpush1.msra.mxu0 0.0
  %255 = vmatprep.subr.mxu0 0.0
  %256 = vmatpush1.msra.mxu0 0.0
  %257 = vmatprep.subr.mxu0 0.0
  %258 = vmatpush1.msra.mxu0 0.0
  %259 = vmatprep.subr.mxu0 0.0
  %260 = vmatpush1.msra.mxu0 %v215
  %261 = vmatprep.subr.mxu0 0.0
  %262 = vmatpush1.msra.mxu0 %v214
  %263 = vmatprep.subr.mxu0 0.0
  %264 = vmatpush1.msra.mxu0 %v213
  %265 = vmatprep.subr.mxu0 0.0
  %266 = vmatpush1.msra.mxu0 %v212
  %267 = vmatprep.subr.mxu0 0.0
  %268 = vmatpush2.msra.mxu0 0.0
  %269 = vmatprep.subr.mxu0 0.0
  %270 = vmatpush2.msra.mxu0 0.0
  %271 = vmatprep.subr.mxu0 0.0
  %272 = vmatpush2.msra.mxu0 0.0
  %273 = vmatprep.subr.mxu0 0.0
  %274 = vmatpush2.msra.mxu0 0.0
  %275 = vmatprep.subr.mxu0 0.0
  %276 = vmatpush2.msra.mxu0 0.0
  %277 = vmatprep.subr.mxu0 0.0
  %278 = vmatpush2.msra.mxu0 0.0
  %279 = vmatprep.subr.mxu0 0.0
  %280 = vmatpush2.msra.mxu0 0.0
  %281 = vmatprep.subr.mxu0 0.0
  %282 = vmatpush2.msra.mxu0 0.0
  %283 = vmatprep.subr.mxu0 0.0
  %284 = vmatpush2.msra.mxu0 0.0
  %285 = vmatprep.subr.mxu0 0.0
  %286 = vmatpush2.msra.mxu0 0.0
  %287 = vmatprep.subr.mxu0 0.0
  %288 = vmatpush2.msra.mxu0 0.0
  %289 = vmatprep.subr.mxu0 0.0
  %290 = vmatpush2.msra.mxu0 0.0
  %291 = vmatprep.subr.mxu0 0.0
  %292 = vmatpush2.msra.mxu0 0.0
  %293 = vmatprep.subr.mxu0 0.0
  %294 = vmatpush2.msra.mxu0 0.0
  %295 = vmatprep.subr.mxu0 0.0
  %296 = vmatpush2.msra.mxu0 0.0
  %297 = vmatprep.subr.mxu0 0.0
  %298 = vmatpush2.msra.mxu0 0.0
  %299 = vmatprep.mubr.f32.mxu0 0.0
  %300 = vmatmul.mubr.f32.gmra.mxu0 %v230
  %v301 = vpop.f32.mrf.mxu0
  %v302 = vadd.f32 %v227, %v301
  %v303 = vpop.f32.mrf.mxu0
  %304 = vmatprep.mubr.f32.mxu0 0.0
  %305 = vmatmul.mubr.f32.gmra.mxu0 %v233
  %v306 = vpop.f32.mrf.mxu0
  %v307 = vadd.f32 %v227, %v306
  %v308 = vpop.f32.mrf.mxu0
  %309 = vdwg.mxu0
  %310 = vst [vmem:[#allocation3] sm:$0xff] %v302
  %311 = vst [vmem:[#allocation3 + $0x8] sm:$0xff] %v307
  %v312 = vld [vmem:[#allocation3] sm:$0xff]
  %v314 = vsel %vm209, 0.0, 0
  %316 = vmatprep.subr.mxu0 0.0
  %317 = vmatpush1.msra.mxu0 0.0
  %318 = vmatprep.subr.mxu0 0.0
  %319 = vmatpush1.msra.mxu0 0.0
  %320 = vmatprep.subr.mxu0 0.0
  %321 = vmatpush1.msra.mxu0 0.0
  %322 = vmatprep.subr.mxu0 0.0
  %323 = vmatpush1.msra.mxu0 0.0
  %324 = vmatprep.subr.mxu0 0.0
  %325 = vmatpush1.msra.mxu0 0.0
  %326 = vmatprep.subr.mxu0 0.0
  %327 = vmatpush1.msra.mxu0 0.0
  %328 = vmatprep.subr.mxu0 0.0
  %329 = vmatpush1.msra.mxu0 0.0
  %330 = vmatprep.subr.mxu0 0.0
  %331 = vmatpush1.msra.mxu0 0.0
  %332 = vmatprep.subr.mxu0 0.0
  %333 = vmatpush1.msra.mxu0 0.0
  %334 = vmatprep.subr.mxu0 0.0
  %335 = vmatpush1.msra.mxu0 0.0
  %336 = vmatprep.subr.mxu0 0.0
  %337 = vmatpush1.msra.mxu0 0.0
  %338 = vmatprep.subr.mxu0 0.0
  %339 = vmatpush1.msra.mxu0 0.0
  %340 = vmatprep.subr.mxu0 0.0
  %341 = vmatpush1.msra.mxu0 %v219
  %342 = vmatprep.subr.mxu0 0.0
  %343 = vmatpush1.msra.mxu0 %v218
  %344 = vmatprep.subr.mxu0 0.0
  %345 = vmatpush1.msra.mxu0 %v217
  %346 = vmatprep.subr.mxu0 0.0
  %347 = vmatpush1.msra.mxu0 %v216
  %348 = vmatprep.subr.mxu0 0.0
  %349 = vmatpush2.msra.mxu0 0.0
  %350 = vmatprep.subr.mxu0 0.0
  %351 = vmatpush2.msra.mxu0 0.0
  %352 = vmatprep.subr.mxu0 0.0
  %353 = vmatpush2.msra.mxu0 0.0
  %354 = vmatprep.subr.mxu0 0.0
  %355 = vmatpush2.msra.mxu0 0.0
  %356 = vmatprep.subr.mxu0 0.0
  %357 = vmatpush2.msra.mxu0 0.0
  %358 = vmatprep.subr.mxu0 0.0
  %359 = vmatpush2.msra.mxu0 0.0
  %360 = vmatprep.subr.mxu0 0.0
  %361 = vmatpush2.msra.mxu0 0.0
  %362 = vmatprep.subr.mxu0 0.0
  %363 = vmatpush2.msra.mxu0 0.0
  %364 = vmatprep.subr.mxu0 0.0
  %365 = vmatpush2.msra.mxu0 0.0
  %366 = vmatprep.subr.mxu0 0.0
  %367 = vmatpush2.msra.mxu0 0.0
  %368 = vmatprep.subr.mxu0 0.0
  %369 = vmatpush2.msra.mxu0 0.0
  %370 = vmatprep.subr.mxu0 0.0
  %371 = vmatpush2.msra.mxu0 0.0
  %372 = vmatprep.subr.mxu0 0.0
  %373 = vmatpush2.msra.mxu0 0.0
  %374 = vmatprep.subr.mxu0 0.0
  %375 = vmatpush2.msra.mxu0 0.0
  %376 = vmatprep.subr.mxu0 0.0
  %377 = vmatpush2.msra.mxu0 0.0
  %378 = vmatprep.subr.mxu0 0.0
  %379 = vmatpush2.msra.mxu0 0.0
  %380 = vmatprep.mubr.f32.mxu0 0.0
  %381 = vmatmul.mubr.f32.gmra.mxu0 %v314
  %v382 = vpop.f32.mrf.mxu0
  %v383 = vadd.f32 0.0, %v382
  %v384 = vpop.f32.mrf.mxu0
  %385 = vdwg.mxu0
  %v386 = vadd.f32 %v312, %v383
  %v387 = vxor.u32 %v386, 2147483648
  %v388 = vmul.f32 %v387, 1.442695
  %v389 = vpow.pop %v388
  %v390 = vadd.f32 %v389, 1.0
  %v391 = vrcp.pop %v390
  %v392 = vmul.f32 1.0, %v391
  %v393 = vtanh.pop %v386
  %v394 = vmul.f32 %v392, 0.0
  %396 = vrot.lane.b32.xlu0 %v393, 64
  %v397 = vpop.permute.xlu0 %396
  %v399 = vmul.f32 %v392, %v397
  %401 = vrot.lane.b32.xlu0 %v399, 32
  %v402 = vpop.permute.xlu0 %401
  %v404 = vadd.f32 %v394, %v402
  %v405 = vtanh.pop %v404
  %407 = vrot.lane.b32.xlu0 %v405, 64
  %v408 = vpop.permute.xlu0 %407
  %v410 = vmul.f32 %v392, %v408
  %412 = vrot.lane.b32.xlu0 %v410, 32
  %v413 = vpop.permute.xlu0 %412
  %415 = vst.msk [vmem:[#allocation2] sm:$0xff] %vm209, %v413
  %v416 = vld [vmem:[#allocation3 + $0x8] sm:$0xff]
  %v417 = vsel %vm209, %v413, 0
  %419 = vmatprep.subr.mxu0 0.0
  %420 = vmatpush1.msra.mxu0 0.0
  %421 = vmatprep.subr.mxu0 0.0
  %422 = vmatpush1.msra.mxu0 0.0
  %423 = vmatprep.subr.mxu0 0.0
  %424 = vmatpush1.msra.mxu0 0.0
  %425 = vmatprep.subr.mxu0 0.0
  %426 = vmatpush1.msra.mxu0 0.0
  %427 = vmatprep.subr.mxu0 0.0
  %428 = vmatpush1.msra.mxu0 0.0
  %429 = vmatprep.subr.mxu0 0.0
  %430 = vmatpush1.msra.mxu0 0.0
  %431 = vmatprep.subr.mxu0 0.0
  %432 = vmatpush1.msra.mxu0 0.0
  %433 = vmatprep.subr.mxu0 0.0
  %434 = vmatpush1.msra.mxu0 0.0
  %435 = vmatprep.subr.mxu0 0.0
  %436 = vmatpush1.msra.mxu0 0.0
  %437 = vmatprep.subr.mxu0 0.0
  %438 = vmatpush1.msra.mxu0 0.0
  %439 = vmatprep.subr.mxu0 0.0
  %440 = vmatpush1.msra.mxu0 0.0
  %441 = vmatprep.subr.mxu0 0.0
  %442 = vmatpush1.msra.mxu0 0.0
  %443 = vmatprep.subr.mxu0 0.0
  %444 = vmatpush1.msra.mxu0 %v219
  %445 = vmatprep.subr.mxu0 0.0
  %446 = vmatpush1.msra.mxu0 %v218
  %447 = vmatprep.subr.mxu0 0.0
  %448 = vmatpush1.msra.mxu0 %v217
  %449 = vmatprep.subr.mxu0 0.0
  %450 = vmatpush1.msra.mxu0 %v216
  %451 = vmatprep.subr.mxu0 0.0
  %452 = vmatpush2.msra.mxu0 0.0
  %453 = vmatprep.subr.mxu0 0.0
  %454 = vmatpush2.msra.mxu0 0.0
  %455 = vmatprep.subr.mxu0 0.0
  %456 = vmatpush2.msra.mxu0 0.0
  %457 = vmatprep.subr.mxu0 0.0
  %458 = vmatpush2.msra.mxu0 0.0
  %459 = vmatprep.subr.mxu0 0.0
  %460 = vmatpush2.msra.mxu0 0.0
  %461 = vmatprep.subr.mxu0 0.0
  %462 = vmatpush2.msra.mxu0 0.0
  %463 = vmatprep.subr.mxu0 0.0
  %464 = vmatpush2.msra.mxu0 0.0
  %465 = vmatprep.subr.mxu0 0.0
  %466 = vmatpush2.msra.mxu0 0.0
  %467 = vmatprep.subr.mxu0 0.0
  %468 = vmatpush2.msra.mxu0 0.0
  %469 = vmatprep.subr.mxu0 0.0
  %470 = vmatpush2.msra.mxu0 0.0
  %471 = vmatprep.subr.mxu0 0.0
  %472 = vmatpush2.msra.mxu0 0.0
  %473 = vmatprep.subr.mxu0 0.0
  %474 = vmatpush2.msra.mxu0 0.0
  %475 = vmatprep.subr.mxu0 0.0
  %476 = vmatpush2.msra.mxu0 0.0
  %477 = vmatprep.subr.mxu0 0.0
  %478 = vmatpush2.msra.mxu0 0.0
  %479 = vmatprep.subr.mxu0 0.0
  %480 = vmatpush2.msra.mxu0 0.0
  %481 = vmatprep.subr.mxu0 0.0
  %482 = vmatpush2.msra.mxu0 0.0
  %483 = vmatprep.mubr.f32.mxu0 0.0
  %484 = vmatmul.mubr.f32.gmra.mxu0 %v417
  %v485 = vpop.f32.mrf.mxu0
  %v486 = vadd.f32 0.0, %v485
  %v487 = vpop.f32.mrf.mxu0
  %488 = vdwg.mxu0
  %v489 = vadd.f32 %v416, %v486
  %v490 = vxor.u32 %v489, 2147483648
  %v491 = vmul.f32 %v490, 1.442695
  %v492 = vpow.pop %v491
  %v493 = vadd.f32 %v492, 1.0
  %v494 = vrcp.pop %v493
  %v495 = vmul.f32 1.0, %v494
  %v496 = vtanh.pop %v489
  %v497 = vmul.f32 %v495, %v404
  %499 = vrot.lane.b32.xlu0 %v496, 64
  %v500 = vpop.permute.xlu0 %499
  %v502 = vmul.f32 %v495, %v500
  %504 = vrot.lane.b32.xlu0 %v502, 32
  %v505 = vpop.permute.xlu0 %504
  %v507 = vadd.f32 %v497, %v505
  %v508 = vtanh.pop %v507
  %510 = vrot.lane.b32.xlu0 %v508, 64
  %v511 = vpop.permute.xlu0 %510
  %v513 = vmul.f32 %v495, %v511
  %515 = vrot.lane.b32.xlu0 %v513, 32
  %v516 = vpop.permute.xlu0 %515
  %518 = vst.msk [vmem:[#allocation2 + $0x8] sm:$0xff] %vm209, %v516
  %s519 = scalar_lea.vmem %s4, 32
  %v520 = vld [vmem:[%s519] sm:$0xff]
  %v521 = vld [vmem:[%s519 + $0x8] sm:$0xff]
  %v522 = vld [vmem:[%s519 + $0x10] sm:$0xff]
  %v523 = vld [vmem:[%s519 + $0x18] sm:$0xff]
  %s524 = scalar_lea.vmem %s5, 32
  %v525 = vld [vmem:[%s524] sm:$0xff]
  %v526 = vld [vmem:[%s524 + $0x8] sm:$0xff]
  %v527 = vld [vmem:[%s524 + $0x10] sm:$0xff]
  %v528 = vld [vmem:[%s524 + $0x18] sm:$0xff]
  %s529 = scalar_lea.vmem %s6, 1
  %v530 = vld [vmem:[%s529] sm:$0x1]
  %v531 = vld [vmem:[#allocation2] sm:$0xff]
  %v532 = vld [vmem:[#allocation2 + $0x8] sm:$0xff]
  %v534 = vlaneseq
  %v535 = vshrl.u32 %v534, 7
  %v536 = vsub.s32 0, %v535
  %v537 = vrot.slane %v530, %v536
  %v540 = vsel %vm209, %v531, 0
  %v543 = vsel %vm209, %v532, 0
  %545 = vmatprep.subr.mxu0 0.0
  %546 = vmatpush1.msra.mxu0 0.0
  %547 = vmatprep.subr.mxu0 0.0
  %548 = vmatpush1.msra.mxu0 0.0
  %549 = vmatprep.subr.mxu0 0.0
  %550 = vmatpush1.msra.mxu0 0.0
  %551 = vmatprep.subr.mxu0 0.0
  %552 = vmatpush1.msra.mxu0 0.0
  %553 = vmatprep.subr.mxu0 0.0
  %554 = vmatpush1.msra.mxu0 0.0
  %555 = vmatprep.subr.mxu0 0.0
  %556 = vmatpush1.msra.mxu0 0.0
  %557 = vmatprep.subr.mxu0 0.0
  %558 = vmatpush1.msra.mxu0 0.0
  %559 = vmatprep.subr.mxu0 0.0
  %560 = vmatpush1.msra.mxu0 0.0
  %561 = vmatprep.subr.mxu0 0.0
  %562 = vmatpush1.msra.mxu0 0.0
  %563 = vmatprep.subr.mxu0 0.0
  %564 = vmatpush1.msra.mxu0 0.0
  %565 = vmatprep.subr.mxu0 0.0
  %566 = vmatpush1.msra.mxu0 0.0
  %567 = vmatprep.subr.mxu0 0.0
  %568 = vmatpush1.msra.mxu0 0.0
  %569 = vmatprep.subr.mxu0 0.0
  %570 = vmatpush1.msra.mxu0 %v523
  %571 = vmatprep.subr.mxu0 0.0
  %572 = vmatpush1.msra.mxu0 %v522
  %573 = vmatprep.subr.mxu0 0.0
  %574 = vmatpush1.msra.mxu0 %v521
  %575 = vmatprep.subr.mxu0 0.0
  %576 = vmatpush1.msra.mxu0 %v520
  %577 = vmatprep.subr.mxu0 0.0
  %578 = vmatpush2.msra.mxu0 0.0
  %579 = vmatprep.subr.mxu0 0.0
  %580 = vmatpush2.msra.mxu0 0.0
  %581 = vmatprep.subr.mxu0 0.0
  %582 = vmatpush2.msra.mxu0 0.0
  %583 = vmatprep.subr.mxu0 0.0
  %584 = vmatpush2.msra.mxu0 0.0
  %585 = vmatprep.subr.mxu0 0.0
  %586 = vmatpush2.msra.mxu0 0.0
  %587 = vmatprep.subr.mxu0 0.0
  %588 = vmatpush2.msra.mxu0 0.0
  %589 = vmatprep.subr.mxu0 0.0
  %590 = vmatpush2.msra.mxu0 0.0
  %591 = vmatprep.subr.mxu0 0.0
  %592 = vmatpush2.msra.mxu0 0.0
  %593 = vmatprep.subr.mxu0 0.0
  %594 = vmatpush2.msra.mxu0 0.0
  %595 = vmatprep.subr.mxu0 0.0
  %596 = vmatpush2.msra.mxu0 0.0
  %597 = vmatprep.subr.mxu0 0.0
  %598 = vmatpush2.msra.mxu0 0.0
  %599 = vmatprep.subr.mxu0 0.0
  %600 = vmatpush2.msra.mxu0 0.0
  %601 = vmatprep.subr.mxu0 0.0
  %602 = vmatpush2.msra.mxu0 0.0
  %603 = vmatprep.subr.mxu0 0.0
  %604 = vmatpush2.msra.mxu0 0.0
  %605 = vmatprep.subr.mxu0 0.0
  %606 = vmatpush2.msra.mxu0 0.0
  %607 = vmatprep.subr.mxu0 0.0
  %608 = vmatpush2.msra.mxu0 0.0
  %609 = vmatprep.mubr.f32.mxu0 0.0
  %610 = vmatmul.mubr.f32.gmra.mxu0 %v540
  %v611 = vpop.f32.mrf.mxu0
  %v612 = vadd.f32 %v537, %v611
  %v613 = vpop.f32.mrf.mxu0
  %614 = vmatprep.mubr.f32.mxu0 0.0
  %615 = vmatmul.mubr.f32.gmra.mxu0 %v543
  %v616 = vpop.f32.mrf.mxu0
  %v617 = vadd.f32 %v537, %v616
  %v618 = vpop.f32.mrf.mxu0
  %619 = vdwg.mxu0
  %620 = vst [vmem:[#allocation3] sm:$0xff] %v612
  %621 = vst [vmem:[#allocation3 + $0x8] sm:$0xff] %v617
  %v622 = vld [vmem:[#allocation3] sm:$0xff]
  %623 = vmatprep.subr.mxu0 0.0
  %624 = vmatpush1.msra.mxu0 0.0
  %625 = vmatprep.subr.mxu0 0.0
  %626 = vmatpush1.msra.mxu0 0.0
  %627 = vmatprep.subr.mxu0 0.0
  %628 = vmatpush1.msra.mxu0 0.0
  %629 = vmatprep.subr.mxu0 0.0
  %630 = vmatpush1.msra.mxu0 0.0
  %631 = vmatprep.subr.mxu0 0.0
  %632 = vmatpush1.msra.mxu0 0.0
  %633 = vmatprep.subr.mxu0 0.0
  %634 = vmatpush1.msra.mxu0 0.0
  %635 = vmatprep.subr.mxu0 0.0
  %636 = vmatpush1.msra.mxu0 0.0
  %637 = vmatprep.subr.mxu0 0.0
  %638 = vmatpush1.msra.mxu0 0.0
  %639 = vmatprep.subr.mxu0 0.0
  %640 = vmatpush1.msra.mxu0 0.0
  %641 = vmatprep.subr.mxu0 0.0
  %642 = vmatpush1.msra.mxu0 0.0
  %643 = vmatprep.subr.mxu0 0.0
  %644 = vmatpush1.msra.mxu0 0.0
  %645 = vmatprep.subr.mxu0 0.0
  %646 = vmatpush1.msra.mxu0 0.0
  %647 = vmatprep.subr.mxu0 0.0
  %648 = vmatpush1.msra.mxu0 %v528
  %649 = vmatprep.subr.mxu0 0.0
  %650 = vmatpush1.msra.mxu0 %v527
  %651 = vmatprep.subr.mxu0 0.0
  %652 = vmatpush1.msra.mxu0 %v526
  %653 = vmatprep.subr.mxu0 0.0
  %654 = vmatpush1.msra.mxu0 %v525
  %655 = vmatprep.subr.mxu0 0.0
  %656 = vmatpush2.msra.mxu0 0.0
  %657 = vmatprep.subr.mxu0 0.0
  %658 = vmatpush2.msra.mxu0 0.0
  %659 = vmatprep.subr.mxu0 0.0
  %660 = vmatpush2.msra.mxu0 0.0
  %661 = vmatprep.subr.mxu0 0.0
  %662 = vmatpush2.msra.mxu0 0.0
  %663 = vmatprep.subr.mxu0 0.0
  %664 = vmatpush2.msra.mxu0 0.0
  %665 = vmatprep.subr.mxu0 0.0
  %666 = vmatpush2.msra.mxu0 0.0
  %667 = vmatprep.subr.mxu0 0.0
  %668 = vmatpush2.msra.mxu0 0.0
  %669 = vmatprep.subr.mxu0 0.0
  %670 = vmatpush2.msra.mxu0 0.0
  %671 = vmatprep.subr.mxu0 0.0
  %672 = vmatpush2.msra.mxu0 0.0
  %673 = vmatprep.subr.mxu0 0.0
  %674 = vmatpush2.msra.mxu0 0.0
  %675 = vmatprep.subr.mxu0 0.0
  %676 = vmatpush2.msra.mxu0 0.0
  %677 = vmatprep.subr.mxu0 0.0
  %678 = vmatpush2.msra.mxu0 0.0
  %679 = vmatprep.subr.mxu0 0.0
  %680 = vmatpush2.msra.mxu0 0.0
  %681 = vmatprep.subr.mxu0 0.0
  %682 = vmatpush2.msra.mxu0 0.0
  %683 = vmatprep.subr.mxu0 0.0
  %684 = vmatpush2.msra.mxu0 0.0
  %685 = vmatprep.subr.mxu0 0.0
  %686 = vmatpush2.msra.mxu0 0.0
  %687 = vmatprep.mubr.f32.mxu0 0.0
  %688 = vmatmul.mubr.f32.gmra.mxu0 %v314
  %v689 = vpop.f32.mrf.mxu0
  %v690 = vadd.f32 0.0, %v689
  %v691 = vpop.f32.mrf.mxu0
  %692 = vdwg.mxu0
  %v693 = vadd.f32 %v622, %v690
  %v694 = vxor.u32 %v693, 2147483648
  %v695 = vmul.f32 %v694, 1.442695
  %v696 = vpow.pop %v695
  %v697 = vadd.f32 %v696, 1.0
  %v698 = vrcp.pop %v697
  %v699 = vmul.f32 1.0, %v698
  %v700 = vtanh.pop %v693
  %v701 = vmul.f32 %v699, 0.0
  %703 = vrot.lane.b32.xlu0 %v700, 64
  %v704 = vpop.permute.xlu0 %703
  %v706 = vmul.f32 %v699, %v704
  %708 = vrot.lane.b32.xlu0 %v706, 32
  %v709 = vpop.permute.xlu0 %708
  %v711 = vadd.f32 %v701, %v709
  %v712 = vtanh.pop %v711
  %714 = vrot.lane.b32.xlu0 %v712, 64
  %v715 = vpop.permute.xlu0 %714
  %v717 = vmul.f32 %v699, %v715
  %719 = vrot.lane.b32.xlu0 %v717, 32
  %v720 = vpop.permute.xlu0 %719
  %722 = vst.msk [vmem:[#allocation2] sm:$0xff] %vm209, %v720
  %v723 = vld [vmem:[#allocation3 + $0x8] sm:$0xff]
  %v724 = vsel %vm209, %v720, 0
  %726 = vmatprep.subr.mxu0 0.0
  %727 = vmatpush1.msra.mxu0 0.0
  %728 = vmatprep.subr.mxu0 0.0
  %729 = vmatpush1.msra.mxu0 0.0
  %730 = vmatprep.subr.mxu0 0.0
  %731 = vmatpush1.msra.mxu0 0.0
  %732 = vmatprep.subr.mxu0 0.0
  %733 = vmatpush1.msra.mxu0 0.0
  %734 = vmatprep.subr.mxu0 0.0
  %735 = vmatpush1.msra.mxu0 0.0
  %736 = vmatprep.subr.mxu0 0.0
  %737 = vmatpush1.msra.mxu0 0.0
  %738 = vmatprep.subr.mxu0 0.0
  %739 = vmatpush1.msra.mxu0 0.0
  %740 = vmatprep.subr.mxu0 0.0
  %741 = vmatpush1.msra.mxu0 0.0
  %742 = vmatprep.subr.mxu0 0.0
  %743 = vmatpush1.msra.mxu0 0.0
  %744 = vmatprep.subr.mxu0 0.0
  %745 = vmatpush1.msra.mxu0 0.0
  %746 = vmatprep.subr.mxu0 0.0
  %747 = vmatpush1.msra.mxu0 0.0
  %748 = vmatprep.subr.mxu0 0.0
  %749 = vmatpush1.msra.mxu0 0.0
  %750 = vmatprep.subr.mxu0 0.0
  %751 = vmatpush1.msra.mxu0 %v528
  %752 = vmatprep.subr.mxu0 0.0
  %753 = vmatpush1.msra.mxu0 %v527
  %754 = vmatprep.subr.mxu0 0.0
  %755 = vmatpush1.msra.mxu0 %v526
  %756 = vmatprep.subr.mxu0 0.0
  %757 = vmatpush1.msra.mxu0 %v525
  %758 = vmatprep.subr.mxu0 0.0
  %759 = vmatpush2.msra.mxu0 0.0
  %760 = vmatprep.subr.mxu0 0.0
  %761 = vmatpush2.msra.mxu0 0.0
  %762 = vmatprep.subr.mxu0 0.0
  %763 = vmatpush2.msra.mxu0 0.0
  %764 = vmatprep.subr.mxu0 0.0
  %765 = vmatpush2.msra.mxu0 0.0
  %766 = vmatprep.subr.mxu0 0.0
  %767 = vmatpush2.msra.mxu0 0.0
  %768 = vmatprep.subr.mxu0 0.0
  %769 = vmatpush2.msra.mxu0 0.0
  %770 = vmatprep.subr.mxu0 0.0
  %771 = vmatpush2.msra.mxu0 0.0
  %772 = vmatprep.subr.mxu0 0.0
  %773 = vmatpush2.msra.mxu0 0.0
  %774 = vmatprep.subr.mxu0 0.0
  %775 = vmatpush2.msra.mxu0 0.0
  %776 = vmatprep.subr.mxu0 0.0
  %777 = vmatpush2.msra.mxu0 0.0
  %778 = vmatprep.subr.mxu0 0.0
  %779 = vmatpush2.msra.mxu0 0.0
  %780 = vmatprep.subr.mxu0 0.0
  %781 = vmatpush2.msra.mxu0 0.0
  %782 = vmatprep.subr.mxu0 0.0
  %783 = vmatpush2.msra.mxu0 0.0
  %784 = vmatprep.subr.mxu0 0.0
  %785 = vmatpush2.msra.mxu0 0.0
  %786 = vmatprep.subr.mxu0 0.0
  %787 = vmatpush2.msra.mxu0 0.0
  %788 = vmatprep.subr.mxu0 0.0
  %789 = vmatpush2.msra.mxu0 0.0
  %790 = vmatprep.mubr.f32.mxu0 0.0
  %791 = vmatmul.mubr.f32.gmra.mxu0 %v724
  %v792 = vpop.f32.mrf.mxu0
  %v793 = vadd.f32 0.0, %v792
  %v794 = vpop.f32.mrf.mxu0
  %795 = vdwg.mxu0
  %v796 = vadd.f32 %v723, %v793
  %v797 = vxor.u32 %v796, 2147483648
  %v798 = vmul.f32 %v797, 1.442695
  %v799 = vpow.pop %v798
  %v800 = vadd.f32 %v799, 1.0
  %v801 = vrcp.pop %v800
  %v802 = vmul.f32 1.0, %v801
  %v803 = vtanh.pop %v796
  %v804 = vmul.f32 %v802, %v711
  %806 = vrot.lane.b32.xlu0 %v803, 64
  %v807 = vpop.permute.xlu0 %806
  %v809 = vmul.f32 %v802, %v807
  %811 = vrot.lane.b32.xlu0 %v809, 32
  %v812 = vpop.permute.xlu0 %811
  %v814 = vadd.f32 %v804, %v812
  %v815 = vtanh.pop %v814
  %817 = vrot.lane.b32.xlu0 %v815, 64
  %v818 = vpop.permute.xlu0 %817
  %v820 = vmul.f32 %v802, %v818
  %822 = vrot.lane.b32.xlu0 %v820, 32
  %v823 = vpop.permute.xlu0 %822
  %825 = vst.msk [vmem:[#allocation2 + $0x8] sm:$0xff] %vm209, %v823
  %v826 = vld [vmem:[#allocation2] sm:$0xff]
  %v827 = vld [vmem:[%s7] sm:$0xff]
  %v828 = vld [vmem:[%s7 + $0x8] sm:$0xff]
  %v829 = vld [vmem:[%s7 + $0x10] sm:$0xff]
  %v830 = vld [vmem:[%s7 + $0x18] sm:$0xff]
  %v831 = vld [vmem:[%s8] sm:$0x1]
  %v833 = vlaneseq
  %v834 = vshrl.u32 %v833, 7
  %v835 = vsub.s32 0, %v834
  %v836 = vrot.slane %v831, %v835
  %v839 = vsel %vm209, %v826, 0
  %841 = vmatprep.subr.mxu0 0.0
  %842 = vmatpush1.msra.mxu0 0.0
  %843 = vmatprep.subr.mxu0 0.0
  %844 = vmatpush1.msra.mxu0 0.0
  %845 = vmatprep.subr.mxu0 0.0
  %846 = vmatpush1.msra.mxu0 0.0
  %847 = vmatprep.subr.mxu0 0.0
  %848 = vmatpush1.msra.mxu0 0.0
  %849 = vmatprep.subr.mxu0 0.0
  %850 = vmatpush1.msra.mxu0 0.0
  %851 = vmatprep.subr.mxu0 0.0
  %852 = vmatpush1.msra.mxu0 0.0
  %853 = vmatprep.subr.mxu0 0.0
  %854 = vmatpush1.msra.mxu0 0.0
  %855 = vmatprep.subr.mxu0 0.0
  %856 = vmatpush1.msra.mxu0 0.0
  %857 = vmatprep.subr.mxu0 0.0
  %858 = vmatpush1.msra.mxu0 0.0
  %859 = vmatprep.subr.mxu0 0.0
  %860 = vmatpush1.msra.mxu0 0.0
  %861 = vmatprep.subr.mxu0 0.0
  %862 = vmatpush1.msra.mxu0 0.0
  %863 = vmatprep.subr.mxu0 0.0
  %864 = vmatpush1.msra.mxu0 0.0
  %865 = vmatprep.subr.mxu0 0.0
  %866 = vmatpush1.msra.mxu0 %v830
  %867 = vmatprep.subr.mxu0 0.0
  %868 = vmatpush1.msra.mxu0 %v829
  %869 = vmatprep.subr.mxu0 0.0
  %870 = vmatpush1.msra.mxu0 %v828
  %871 = vmatprep.subr.mxu0 0.0
  %872 = vmatpush1.msra.mxu0 %v827
  %873 = vmatprep.subr.mxu0 0.0
  %874 = vmatpush2.msra.mxu0 0.0
  %875 = vmatprep.subr.mxu0 0.0
  %876 = vmatpush2.msra.mxu0 0.0
  %877 = vmatprep.subr.mxu0 0.0
  %878 = vmatpush2.msra.mxu0 0.0
  %879 = vmatprep.subr.mxu0 0.0
  %880 = vmatpush2.msra.mxu0 0.0
  %881 = vmatprep.subr.mxu0 0.0
  %882 = vmatpush2.msra.mxu0 0.0
  %883 = vmatprep.subr.mxu0 0.0
  %884 = vmatpush2.msra.mxu0 0.0
  %885 = vmatprep.subr.mxu0 0.0
  %886 = vmatpush2.msra.mxu0 0.0
  %887 = vmatprep.subr.mxu0 0.0
  %888 = vmatpush2.msra.mxu0 0.0
  %889 = vmatprep.subr.mxu0 0.0
  %890 = vmatpush2.msra.mxu0 0.0
  %891 = vmatprep.subr.mxu0 0.0
  %892 = vmatpush2.msra.mxu0 0.0
  %893 = vmatprep.subr.mxu0 0.0
  %894 = vmatpush2.msra.mxu0 0.0
  %895 = vmatprep.subr.mxu0 0.0
  %896 = vmatpush2.msra.mxu0 0.0
  %897 = vmatprep.subr.mxu0 0.0
  %898 = vmatpush2.msra.mxu0 0.0
  %899 = vmatprep.subr.mxu0 0.0
  %900 = vmatpush2.msra.mxu0 0.0
  %901 = vmatprep.subr.mxu0 0.0
  %902 = vmatpush2.msra.mxu0 0.0
  %903 = vmatprep.subr.mxu0 0.0
  %904 = vmatpush2.msra.mxu0 0.0
  %905 = vmatprep.mubr.f32.mxu0 0.0
  %906 = vmatmul.mubr.f32.gmra.mxu0 %v839
  %v907 = vpop.f32.mrf.mxu0
  %v908 = vadd.f32 %v836, %v907
  %v909 = vpop.f32.mrf.mxu0
  %910 = vdwg.mxu0
  %v911 = vld [vmem:[%s9] sm:$0xff]
  %v912 = vld [vmem:[%s9 + $0x8] sm:$0xff]
  %v913 = vld [vmem:[%s9 + $0x10] sm:$0x3]
  %v914 = vld [vmem:[%s10] sm:$0x1]
  %v916 = vlaneseq
  %v917 = vshrl.u32 %v916, 7
  %v918 = vsub.s32 0, %v917
  %v919 = vrot.slane %v914, %v918
  %vm921 = vcmask 146432
  %v923 = vsel %vm921, %v908, 0
  %v926 = vsel %vm130, %v913, 0
  %928 = vmatprep.subr.mxu0 0.0
  %929 = vmatpush1.msra.mxu0 0.0
  %930 = vmatprep.subr.mxu0 0.0
  %931 = vmatpush1.msra.mxu0 0.0
  %932 = vmatprep.subr.mxu0 0.0
  %933 = vmatpush1.msra.mxu0 0.0
  %934 = vmatprep.subr.mxu0 0.0
  %935 = vmatpush1.msra.mxu0 0.0
  %936 = vmatprep.subr.mxu0 0.0
  %937 = vmatpush1.msra.mxu0 0.0
  %938 = vmatprep.subr.mxu0 0.0
  %939 = vmatpush1.msra.mxu0 0.0
  %940 = vmatprep.subr.mxu0 0.0
  %941 = vmatpush1.msra.mxu0 0.0
  %942 = vmatprep.subr.mxu0 0.0
  %943 = vmatpush1.msra.mxu0 0.0
  %944 = vmatprep.subr.mxu0 0.0
  %945 = vmatpush1.msra.mxu0 0.0
  %946 = vmatprep.subr.mxu0 0.0
  %947 = vmatpush1.msra.mxu0 0.0
  %948 = vmatprep.subr.mxu0 0.0
  %949 = vmatpush1.msra.mxu0 0.0
  %950 = vmatprep.subr.mxu0 0.0
  %951 = vmatpush1.msra.mxu0 0.0
  %952 = vmatprep.subr.mxu0 0.0
  %953 = vmatpush1.msra.mxu0 0.0
  %954 = vmatprep.subr.mxu0 0.0
  %955 = vmatpush1.msra.mxu0 %v926
  %956 = vmatprep.subr.mxu0 0.0
  %957 = vmatpush1.msra.mxu0 %v912
  %958 = vmatprep.subr.mxu0 0.0
  %959 = vmatpush1.msra.mxu0 %v911
  %960 = vmatprep.subr.mxu0 0.0
  %961 = vmatpush2.msra.mxu0 0.0
  %962 = vmatprep.subr.mxu0 0.0
  %963 = vmatpush2.msra.mxu0 0.0
  %964 = vmatprep.subr.mxu0 0.0
  %965 = vmatpush2.msra.mxu0 0.0
  %966 = vmatprep.subr.mxu0 0.0
  %967 = vmatpush2.msra.mxu0 0.0
  %968 = vmatprep.subr.mxu0 0.0
  %969 = vmatpush2.msra.mxu0 0.0
  %970 = vmatprep.subr.mxu0 0.0
  %971 = vmatpush2.msra.mxu0 0.0
  %972 = vmatprep.subr.mxu0 0.0
  %973 = vmatpush2.msra.mxu0 0.0
  %974 = vmatprep.subr.mxu0 0.0
  %975 = vmatpush2.msra.mxu0 0.0
  %976 = vmatprep.subr.mxu0 0.0
  %977 = vmatpush2.msra.mxu0 0.0
  %978 = vmatprep.subr.mxu0 0.0
  %979 = vmatpush2.msra.mxu0 0.0
  %980 = vmatprep.subr.mxu0 0.0
  %981 = vmatpush2.msra.mxu0 0.0
  %982 = vmatprep.subr.mxu0 0.0
  %983 = vmatpush2.msra.mxu0 0.0
  %984 = vmatprep.subr.mxu0 0.0
  %985 = vmatpush2.msra.mxu0 0.0
  %986 = vmatprep.subr.mxu0 0.0
  %987 = vmatpush2.msra.mxu0 0.0
  %988 = vmatprep.subr.mxu0 0.0
  %989 = vmatpush2.msra.mxu0 0.0
  %990 = vmatprep.subr.mxu0 0.0
  %991 = vmatpush2.msra.mxu0 0.0
  %992 = vmatprep.mubr.f32.mxu0 0.0
  %993 = vmatmul.mubr.f32.gmra.mxu0 %v923
  %v994 = vpop.f32.mrf.mxu0
  %v995 = vadd.f32 %v919, %v994
  %v996 = vpop.f32.mrf.mxu0
  %997 = vdwg.mxu0
  %v998 = vmax.f32 %v995, 0.0
  %999 = vst [vmem:[%s11] sm:$0xff] %v998
  %v1000 = vld [vmem:[#allocation2 + $0x8] sm:$0xff]
  %v1001 = vld [vmem:[%s7] sm:$0xff]
  %v1002 = vld [vmem:[%s7 + $0x8] sm:$0xff]
  %v1003 = vld [vmem:[%s7 + $0x10] sm:$0xff]
  %v1004 = vld [vmem:[%s7 + $0x18] sm:$0xff]
  %v1005 = vld [vmem:[%s8] sm:$0x1]
  %v1007 = vlaneseq
  %v1008 = vshrl.u32 %v1007, 7
  %v1009 = vsub.s32 0, %v1008
  %v1010 = vrot.slane %v1005, %v1009
  %v1013 = vsel %vm209, %v1000, 0
  %1015 = vmatprep.subr.mxu0 0.0
  %1016 = vmatpush1.msra.mxu0 0.0
  %1017 = vmatprep.subr.mxu0 0.0
  %1018 = vmatpush1.msra.mxu0 0.0
  %1019 = vmatprep.subr.mxu0 0.0
  %1020 = vmatpush1.msra.mxu0 0.0
  %1021 = vmatprep.subr.mxu0 0.0
  %1022 = vmatpush1.msra.mxu0 0.0
  %1023 = vmatprep.subr.mxu0 0.0
  %1024 = vmatpush1.msra.mxu0 0.0
  %1025 = vmatprep.subr.mxu0 0.0
  %1026 = vmatpush1.msra.mxu0 0.0
  %1027 = vmatprep.subr.mxu0 0.0
  %1028 = vmatpush1.msra.mxu0 0.0
  %1029 = vmatprep.subr.mxu0 0.0
  %1030 = vmatpush1.msra.mxu0 0.0
  %1031 = vmatprep.subr.mxu0 0.0
  %1032 = vmatpush1.msra.mxu0 0.0
  %1033 = vmatprep.subr.mxu0 0.0
  %1034 = vmatpush1.msra.mxu0 0.0
  %1035 = vmatprep.subr.mxu0 0.0
  %1036 = vmatpush1.msra.mxu0 0.0
  %1037 = vmatprep.subr.mxu0 0.0
  %1038 = vmatpush1.msra.mxu0 0.0
  %1039 = vmatprep.subr.mxu0 0.0
  %1040 = vmatpush1.msra.mxu0 %v1004
  %1041 = vmatprep.subr.mxu0 0.0
  %1042 = vmatpush1.msra.mxu0 %v1003
  %1043 = vmatprep.subr.mxu0 0.0
  %1044 = vmatpush1.msra.mxu0 %v1002
  %1045 = vmatprep.subr.mxu0 0.0
  %1046 = vmatpush1.msra.mxu0 %v1001
  %1047 = vmatprep.subr.mxu0 0.0
  %1048 = vmatpush2.msra.mxu0 0.0
  %1049 = vmatprep.subr.mxu0 0.0
  %1050 = vmatpush2.msra.mxu0 0.0
  %1051 = vmatprep.subr.mxu0 0.0
  %1052 = vmatpush2.msra.mxu0 0.0
  %1053 = vmatprep.subr.mxu0 0.0
  %1054 = vmatpush2.msra.mxu0 0.0
  %1055 = vmatprep.subr.mxu0 0.0
  %1056 = vmatpush2.msra.mxu0 0.0
  %1057 = vmatprep.subr.mxu0 0.0
  %1058 = vmatpush2.msra.mxu0 0.0
  %1059 = vmatprep.subr.mxu0 0.0
  %1060 = vmatpush2.msra.mxu0 0.0
  %1061 = vmatprep.subr.mxu0 0.0
  %1062 = vmatpush2.msra.mxu0 0.0
  %1063 = vmatprep.subr.mxu0 0.0
  %1064 = vmatpush2.msra.mxu0 0.0
  %1065 = vmatprep.subr.mxu0 0.0
  %1066 = vmatpush2.msra.mxu0 0.0
  %1067 = vmatprep.subr.mxu0 0.0
  %1068 = vmatpush2.msra.mxu0 0.0
  %1069 = vmatprep.subr.mxu0 0.0
  %1070 = vmatpush2.msra.mxu0 0.0
  %1071 = vmatprep.subr.mxu0 0.0
  %1072 = vmatpush2.msra.mxu0 0.0
  %1073 = vmatprep.subr.mxu0 0.0
  %1074 = vmatpush2.msra.mxu0 0.0
  %1075 = vmatprep.subr.mxu0 0.0
  %1076 = vmatpush2.msra.mxu0 0.0
  %1077 = vmatprep.subr.mxu0 0.0
  %1078 = vmatpush2.msra.mxu0 0.0
  %1079 = vmatprep.mubr.f32.mxu0 0.0
  %1080 = vmatmul.mubr.f32.gmra.mxu0 %v1013
  %v1081 = vpop.f32.mrf.mxu0
  %v1082 = vadd.f32 %v1010, %v1081
  %v1083 = vpop.f32.mrf.mxu0
  %1084 = vdwg.mxu0
  %s1085 = scalar_lea.vmem %s9, 24
  %v1086 = vld [vmem:[%s1085] sm:$0xff]
  %v1087 = vld [vmem:[%s1085 + $0x8] sm:$0xff]
  %v1088 = vld [vmem:[%s1085 + $0x10] sm:$0x3]
  %v1089 = vld [vmem:[%s10] sm:$0x1]
  %v1091 = vlaneseq
  %v1092 = vshrl.u32 %v1091, 7
  %v1093 = vsub.s32 0, %v1092
  %v1094 = vrot.slane %v1089, %v1093
  %v1097 = vsel %vm921, %v1082, 0
  %v1100 = vsel %vm130, %v1088, 0
  %1102 = vmatprep.subr.mxu0 0.0
  %1103 = vmatpush1.msra.mxu0 0.0
  %1104 = vmatprep.subr.mxu0 0.0
  %1105 = vmatpush1.msra.mxu0 0.0
  %1106 = vmatprep.subr.mxu0 0.0
  %1107 = vmatpush1.msra.mxu0 0.0
  %1108 = vmatprep.subr.mxu0 0.0
  %1109 = vmatpush1.msra.mxu0 0.0
  %1110 = vmatprep.subr.mxu0 0.0
  %1111 = vmatpush1.msra.mxu0 0.0
  %1112 = vmatprep.subr.mxu0 0.0
  %1113 = vmatpush1.msra.mxu0 0.0
  %1114 = vmatprep.subr.mxu0 0.0
  %1115 = vmatpush1.msra.mxu0 0.0
  %1116 = vmatprep.subr.mxu0 0.0
  %1117 = vmatpush1.msra.mxu0 0.0
  %1118 = vmatprep.subr.mxu0 0.0
  %1119 = vmatpush1.msra.mxu0 0.0
  %1120 = vmatprep.subr.mxu0 0.0
  %1121 = vmatpush1.msra.mxu0 0.0
  %1122 = vmatprep.subr.mxu0 0.0
  %1123 = vmatpush1.msra.mxu0 0.0
  %1124 = vmatprep.subr.mxu0 0.0
  %1125 = vmatpush1.msra.mxu0 0.0
  %1126 = vmatprep.subr.mxu0 0.0
  %1127 = vmatpush1.msra.mxu0 0.0
  %1128 = vmatprep.subr.mxu0 0.0
  %1129 = vmatpush1.msra.mxu0 %v1100
  %1130 = vmatprep.subr.mxu0 0.0
  %1131 = vmatpush1.msra.mxu0 %v1087
  %1132 = vmatprep.subr.mxu0 0.0
  %1133 = vmatpush1.msra.mxu0 %v1086
  %1134 = vmatprep.subr.mxu0 0.0
  %1135 = vmatpush2.msra.mxu0 0.0
  %1136 = vmatprep.subr.mxu0 0.0
  %1137 = vmatpush2.msra.mxu0 0.0
  %1138 = vmatprep.subr.mxu0 0.0
  %1139 = vmatpush2.msra.mxu0 0.0
  %1140 = vmatprep.subr.mxu0 0.0
  %1141 = vmatpush2.msra.mxu0 0.0
  %1142 = vmatprep.subr.mxu0 0.0
  %1143 = vmatpush2.msra.mxu0 0.0
  %1144 = vmatprep.subr.mxu0 0.0
  %1145 = vmatpush2.msra.mxu0 0.0
  %1146 = vmatprep.subr.mxu0 0.0
  %1147 = vmatpush2.msra.mxu0 0.0
  %1148 = vmatprep.subr.mxu0 0.0
  %1149 = vmatpush2.msra.mxu0 0.0
  %1150 = vmatprep.subr.mxu0 0.0
  %1151 = vmatpush2.msra.mxu0 0.0
  %1152 = vmatprep.subr.mxu0 0.0
  %1153 = vmatpush2.msra.mxu0 0.0
  %1154 = vmatprep.subr.mxu0 0.0
  %1155 = vmatpush2.msra.mxu0 0.0
  %1156 = vmatprep.subr.mxu0 0.0
  %1157 = vmatpush2.msra.mxu0 0.0
  %1158 = vmatprep.subr.mxu0 0.0
  %1159 = vmatpush2.msra.mxu0 0.0
  %1160 = vmatprep.subr.mxu0 0.0
  %1161 = vmatpush2.msra.mxu0 0.0
  %1162 = vmatprep.subr.mxu0 0.0
  %1163 = vmatpush2.msra.mxu0 0.0
  %1164 = vmatprep.subr.mxu0 0.0
  %1165 = vmatpush2.msra.mxu0 0.0
  %1166 = vmatprep.mubr.f32.mxu0 0.0
  %1167 = vmatmul.mubr.f32.gmra.mxu0 %v1097
  %v1168 = vpop.f32.mrf.mxu0
  %v1169 = vadd.f32 %v1094, %v1168
  %v1170 = vpop.f32.mrf.mxu0
  %1171 = vdwg.mxu0
  %v1172 = vmax.f32 %v1169, 0.0
  %1173 = vst [vmem:[%s11 + $0x8] sm:$0xff] %v1172
  // Predicated region
  $region46: #{cnn_decoder_forward_pallas.1} parent=0 // pred_check
    _
  $region47: #{cnn_decoder_forward_pallas.1} parent=0 // pred_check_branch
    %1175 = sbr.rel (0) target = $region49
  $region48: #{cnn_decoder_forward_pallas.1} parent=0 // pred_region
    _
  $region49: #{cnn_decoder_forward_pallas.1} parent=0 // pred_fallthru
    _
  // Predicated region
  $region50: #{cnn_decoder_forward_pallas.1} parent=0 // pred_check
    _
  $region51: #{cnn_decoder_forward_pallas.1} parent=0 // pred_check_branch
    %1177 = sbr.rel (0) target = $region53
  $region52: #{cnn_decoder_forward_pallas.1} parent=0 // pred_region
    _
  $region53: #{cnn_decoder_forward_pallas.1} parent=0 // pred_fallthru
    _

</llo_original>
